<compile_context>
chip_gen: v7x
topology: tpu7x:2x2x1
jax: 0.10.0
libtpu: 0.0.40
codegen_flags: <defaults>
</compile_context>

<pallas_src>
import jax
import jax.numpy as jnp
from jax import lax
from jax.experimental import pallas as pl
from jax.experimental.pallas import tpu as pltpu


def _round_up(x: int, m: int) -> int:
    return ((x + m - 1) // m) * m


def _pick_batch_tiling(batch: int, max_tile: int = 512):
    """Pick (tile_b, n_steps) with tile_b a multiple of 8 and minimal padding.

    Prefers an even number of grid steps (balanced megacore split on v7x) once
    the batch is large enough; uses a single step for small batches so the
    fixed per-step pipeline cost is paid once (v5e/v6e are single-core).
    """
    if batch <= max_tile:
        n_steps = 2 if (batch >= 256 and batch % 2 == 0) else 1
    else:
        n_steps = -(-batch // max_tile)
        if n_steps % 2:
            n_steps += 1
    tile_b = _round_up(-(-batch // n_steps), 8)
    return tile_b, n_steps


def ngram_kernel(idx_ref, t1_ref, b1_ref, w2t_ref, b2_ref, out_ref):
    """One batch tile: per-slot (gather+linear1) GEMMs -> relu -> linear2 -> log_softmax.

    idx_ref : VMEM (TILE_B, n_ctx) int32      clamped token ids per context slot
    t1_ref  : VMEM (n_ctx, V_pad, H) f32      fused tables T_i = emb @ W1_i.T
    b1_ref  : VMEM (1, H) f32                 linear1 bias
    w2t_ref : VMEM (H, V_pad) f32             linear2 weight, transposed + vocab-padded
    b2_ref  : VMEM (1, V_pad) f32             linear2 bias (padded lanes = -1e30)
    out_ref : VMEM (TILE_B, V_pad) f32        log-probs (padded lanes junk, sliced off)
    """
    tile_b, n_ctx = idx_ref.shape
    v_pad = t1_ref.shape[1]

    # Shared column iota, reused by every slot's compare (VPU only, ~tile_b/8*1 vregs
    # per compare result; stays register-resident instead of spilling).
    col = lax.broadcasted_iota(jnp.int32, (tile_b, v_pad), 1)

    # Slot 0 initializes the accumulator (no zeros init), slots 1..n_ctx-1 accumulate.
    # Each slot: one compare+cast (VPU) feeding one K=V_pad MXU dot.
    onehot = (col == idx_ref[:, 0:1]).astype(jnp.float32)
    h = jnp.dot(onehot, t1_ref[0], preferred_element_type=jnp.float32)
    for i in range(1, n_ctx):  # tiny static unroll: n_ctx = 2*context_size
        onehot = (col == idx_ref[:, i:i + 1]).astype(jnp.float32)
        h = h + jnp.dot(onehot, t1_ref[i], preferred_element_type=jnp.float32)

    # linear1 bias + relu.
    h = jnp.maximum(h + b1_ref[...], 0.0)

    # linear2 (lane-dense padded vocab) + numerically stable row-wise log_softmax.
    logits = jnp.dot(h, w2t_ref[...], preferred_element_type=jnp.float32) + b2_ref[...]
    m = jnp.max(logits, axis=1, keepdims=True)
    shifted = logits - m
    lse = jnp.log(jnp.sum(jnp.exp(shifted), axis=1, keepdims=True))
    out_ref[...] = shifted - lse


def ngram_forward_batched(indices, emb_table, w1, b1, w2, b2):
    """Batched forward. indices: (B, 2*context) int. Returns (B, V) log-probs."""
    V, E = emb_table.shape
    H = b1.shape[0]                       # 128
    B, n_ctx = indices.shape
    V_pad = max(128, _round_up(V, 128))   # lane-dense vocab axis

    tile_b, n_steps = _pick_batch_tiling(B)
    B_pad = tile_b * n_steps

    # ---- one-time parameter re-layout (pure glue, outside the kernel) ----
    # w1: (H, n_ctx*E); slot i's slab W1_i = w1[:, i*E:(i+1)*E] of shape (H, E).
    # Fused table T_i = emb @ W1_i.T : (V, H); vocab-pad and stack -> (n_ctx, V_pad, H).
    w1_slabs = w1.reshape(H, n_ctx, E)
    t = jnp.einsum('ve,hie->ivh',
                   emb_table.astype(jnp.float32), w1_slabs.astype(jnp.float32),
                   precision=lax.Precision.HIGHEST)            # (n_ctx, V, H)
    t_big = jnp.zeros((n_ctx, V_pad, H), jnp.float32).at[:, :V, :].set(t)

    b1_r = b1.reshape(1, H).astype(jnp.float32)
    w2t_pad = jnp.zeros((H, V_pad), jnp.float32).at[:, :V].set(w2.T.astype(jnp.float32))
    b2_pad = jnp.full((1, V_pad), -1e30, jnp.float32).at[0, :V].set(b2.astype(jnp.float32))

    # ---- index prep: pad batch (padded rows sliced off later), clamp ----
    idx = jnp.pad(indices.astype(jnp.int32), ((0, B_pad - B), (0, 0)))
    idx = jnp.clip(idx, 0, V - 1)

    out = pl.pallas_call(
        ngram_kernel,
        out_shape=jax.ShapeDtypeStruct((B_pad, V_pad), jnp.float32),
        grid_spec=pltpu.PrefetchScalarGridSpec(
            num_scalar_prefetch=0,
            grid=(n_steps,),
            in_specs=[
                pl.BlockSpec((tile_b, n_ctx), lambda b: (b, 0)),        # idx (streamed)
                pl.BlockSpec((n_ctx, V_pad, H), lambda b: (0, 0, 0)),   # fused tables
                pl.BlockSpec((1, H), lambda b: (0, 0)),                 # b1
                pl.BlockSpec((H, V_pad), lambda b: (0, 0)),             # w2^T (padded)
                pl.BlockSpec((1, V_pad), lambda b: (0, 0)),             # b2 (padded)
            ],
            out_specs=pl.BlockSpec((tile_b, V_pad), lambda b: (b, 0)),
        ),
        compiler_params=pltpu.CompilerParams(
            dimension_semantics=("parallel",)),                         # 2 TCs on v7x
    )(idx, t_big, b1_r, w2t_pad, b2_pad)

    return out[:B, :V]


def ngram_forward(indices, emb_table, w1, b1, w2, b2):
    """Original module signature: inputs (2*context,) int -> (1, V) log-probs."""
    return ngram_forward_batched(indices[None, :], emb_table, w1, b1, w2, b2)


def ngram_reference(indices, emb_table, w1, b1, w2, b2):
    """Pure-JAX reference mirroring the PyTorch forward (batched rows)."""
    with jax.default_matmul_precision("highest"):
        embeds = emb_table[indices].reshape(indices.shape[0], -1)
        out = jnp.maximum(embeds @ w1.T + b1, 0.0)
        out = out @ w2.T + b2
        return jax.nn.log_softmax(out, axis=1)


if __name__ == "__main__":
    # Module hyperparameters (small, consistent with the nn.Module __init__).
    vocab_size = 50
    embedding_dim = 16
    context_size = 2
    n_ctx = 2 * context_size
    in_features = n_ctx * embedding_dim
    hidden = 128

    key = jax.random.PRNGKey(0)
    k_emb, k_w1, k_b1, k_w2, k_b2, k_idx = jax.random.split(key, 6)

    # Deterministic, PyTorch-like init (Embedding ~ N(0,1); Linear ~ U(+-1/sqrt(fan_in))).
    emb_table = jax.random.normal(k_emb, (vocab_size, embedding_dim), jnp.float32)
    lim1 = 1.0 / jnp.sqrt(jnp.float32(in_features))
    w1 = jax.random.uniform(k_w1, (hidden, in_features), jnp.float32, -lim1, lim1)
    b1 = jax.random.uniform(k_b1, (hidden,), jnp.float32, -lim1, lim1)
    lim2 = 1.0 / jnp.sqrt(jnp.float32(hidden))
    w2 = jax.random.uniform(k_w2, (vocab_size, hidden), jnp.float32, -lim2, lim2)
    b2 = jax.random.uniform(k_b2, (vocab_size,), jnp.float32, -lim2, lim2)

    # Batched n-gram contexts: B=384 exercises the zero-padding tile_b=192 / grid=2 path.
    batch = 384
    idx_batch = jax.random.randint(k_idx, (batch, n_ctx), 0, vocab_size, jnp.int32)

    out_b = jax.block_until_ready(
        ngram_forward_batched(idx_batch, emb_table, w1, b1, w2, b2))
    ref_b = ngram_reference(idx_batch, emb_table, w1, b1, w2, b2)
    assert out_b.shape == (batch, vocab_size)
    # Tolerance accounts for MXU bf16-pass vs f32 matmul precision differences
    # between the in-kernel dots and the XLA reference (~1e-3 worst case).
    assert jnp.allclose(out_b, ref_b, atol=2e-3, rtol=2e-3), (
        f"batched max abs err {jnp.max(jnp.abs(out_b - ref_b))}")

    # Original single-example module semantics: inputs (2*context,) -> (1, V).
    inputs = idx_batch[0]
    out_1 = jax.block_until_ready(
        ngram_forward(inputs, emb_table, w1, b1, w2, b2))
    assert out_1.shape == (1, vocab_size)
    assert jnp.allclose(out_1, ref_b[:1], atol=2e-3, rtol=2e-3), (
        f"single max abs err {jnp.max(jnp.abs(out_1 - ref_b[:1]))}")

    print("KERNEL_OK")
</pallas_src>

<mosaic_0001>
module attributes {stable_mosaic.version = 11 : i64} {
  func.func @ngram_kernel(%arg0: i32, %arg1: memref<192x4xi32, #tpu.memory_space<vmem>>, %arg2: memref<4x128x128xf32, #tpu.memory_space<vmem>>, %arg3: memref<1x128xf32, #tpu.memory_space<vmem>>, %arg4: memref<128x128xf32, #tpu.memory_space<vmem>>, %arg5: memref<1x128xf32, #tpu.memory_space<vmem>>, %arg6: memref<192x128xf32, #tpu.memory_space<vmem>>) attributes {dimension_semantics = [#tpu.dimension_semantics<parallel>], iteration_bounds = array<i64: 2>, scalar_prefetch = 0 : i64, scratch_operands = 0 : i64, tpu.core_type = #tpu.core_type<tc>, window_params = [{transform_indices = @transform_0, window_bounds = array<i64: 192, 4>}, {pipeline_mode = #tpu.pipeline_mode<synchronous>, transform_indices = @transform_1, window_bounds = array<i64: 4, 128, 128>}, {pipeline_mode = #tpu.pipeline_mode<synchronous>, transform_indices = @transform_2, window_bounds = array<i64: 1, 128>}, {pipeline_mode = #tpu.pipeline_mode<synchronous>, transform_indices = @transform_3, window_bounds = array<i64: 128, 128>}, {pipeline_mode = #tpu.pipeline_mode<synchronous>, transform_indices = @transform_4, window_bounds = array<i64: 1, 128>}, {transform_indices = @transform_5, window_bounds = array<i64: 192, 128>}]} {
    %0 = tpu.iota {dimensions = array<i32: 1>} : vector<192x128xi32>
    %c0 = arith.constant 0 : index
    %c0_0 = arith.constant 0 : index
    %1 = vector.load %arg1[%c0, %c0_0] : memref<192x4xi32, #tpu.memory_space<vmem>>, vector<192x1xi32>
    %2 = vector.broadcast %1 : vector<192x1xi32> to vector<192x128xi32>
    %3 = arith.cmpi eq, %0, %2 : vector<192x128xi32>
    %4 = arith.extui %3 : vector<192x128xi1> to vector<192x128xi32>
    %5 = arith.sitofp %4 : vector<192x128xi32> to vector<192x128xf32>
    %c0_1 = arith.constant 0 : index
    %c0_2 = arith.constant 0 : index
    %c0_3 = arith.constant 0 : index
    %6 = vector.load %arg2[%c0_1, %c0_2, %c0_3] : memref<4x128x128xf32, #tpu.memory_space<vmem>>, vector<1x128x128xf32>
    %7 = vector.shape_cast %6 : vector<1x128x128xf32> to vector<128x128xf32>
    %cst = arith.constant dense<0.000000e+00> : vector<192x128xf32>
    %8 = tpu.matmul %5, %7, %cst {dimension_numbers = #tpu.dot_dimension_numbers<[1], [0], [0], [1], [0, 0, 1, 1], [], []>} : vector<192x128xf32>, vector<128x128xf32>, vector<192x128xf32> -> vector<192x128xf32>
    %c0_4 = arith.constant 0 : index
    %c1 = arith.constant 1 : index
    %9 = vector.load %arg1[%c0_4, %c1] : memref<192x4xi32, #tpu.memory_space<vmem>>, vector<192x1xi32>
    %10 = vector.broadcast %9 : vector<192x1xi32> to vector<192x128xi32>
    %11 = arith.cmpi eq, %0, %10 : vector<192x128xi32>
    %12 = arith.extui %11 : vector<192x128xi1> to vector<192x128xi32>
    %13 = arith.sitofp %12 : vector<192x128xi32> to vector<192x128xf32>
    %c1_5 = arith.constant 1 : index
    %c0_6 = arith.constant 0 : index
    %c0_7 = arith.constant 0 : index
    %14 = vector.load %arg2[%c1_5, %c0_6, %c0_7] : memref<4x128x128xf32, #tpu.memory_space<vmem>>, vector<1x128x128xf32>
    %15 = vector.shape_cast %14 : vector<1x128x128xf32> to vector<128x128xf32>
    %cst_8 = arith.constant dense<0.000000e+00> : vector<192x128xf32>
    %16 = tpu.matmul %13, %15, %cst_8 {dimension_numbers = #tpu.dot_dimension_numbers<[1], [0], [0], [1], [0, 0, 1, 1], [], []>} : vector<192x128xf32>, vector<128x128xf32>, vector<192x128xf32> -> vector<192x128xf32>
    %17 = arith.addf %8, %16 : vector<192x128xf32>
    %c0_9 = arith.constant 0 : index
    %c2 = arith.constant 2 : index
    %18 = vector.load %arg1[%c0_9, %c2] : memref<192x4xi32, #tpu.memory_space<vmem>>, vector<192x1xi32>
    %19 = vector.broadcast %18 : vector<192x1xi32> to vector<192x128xi32>
    %20 = arith.cmpi eq, %0, %19 : vector<192x128xi32>
    %21 = arith.extui %20 : vector<192x128xi1> to vector<192x128xi32>
    %22 = arith.sitofp %21 : vector<192x128xi32> to vector<192x128xf32>
    %c2_10 = arith.constant 2 : index
    %c0_11 = arith.constant 0 : index
    %c0_12 = arith.constant 0 : index
    %23 = vector.load %arg2[%c2_10, %c0_11, %c0_12] : memref<4x128x128xf32, #tpu.memory_space<vmem>>, vector<1x128x128xf32>
    %24 = vector.shape_cast %23 : vector<1x128x128xf32> to vector<128x128xf32>
    %cst_13 = arith.constant dense<0.000000e+00> : vector<192x128xf32>
    %25 = tpu.matmul %22, %24, %cst_13 {dimension_numbers = #tpu.dot_dimension_numbers<[1], [0], [0], [1], [0, 0, 1, 1], [], []>} : vector<192x128xf32>, vector<128x128xf32>, vector<192x128xf32> -> vector<192x128xf32>
    %26 = arith.addf %17, %25 : vector<192x128xf32>
    %c0_14 = arith.constant 0 : index
    %c3 = arith.constant 3 : index
    %27 = vector.load %arg1[%c0_14, %c3] : memref<192x4xi32, #tpu.memory_space<vmem>>, vector<192x1xi32>
    %28 = vector.broadcast %27 : vector<192x1xi32> to vector<192x128xi32>
    %29 = arith.cmpi eq, %0, %28 : vector<192x128xi32>
    %30 = arith.extui %29 : vector<192x128xi1> to vector<192x128xi32>
    %31 = arith.sitofp %30 : vector<192x128xi32> to vector<192x128xf32>
    %c3_15 = arith.constant 3 : index
    %c0_16 = arith.constant 0 : index
    %c0_17 = arith.constant 0 : index
    %32 = vector.load %arg2[%c3_15, %c0_16, %c0_17] : memref<4x128x128xf32, #tpu.memory_space<vmem>>, vector<1x128x128xf32>
    %33 = vector.shape_cast %32 : vector<1x128x128xf32> to vector<128x128xf32>
    %cst_18 = arith.constant dense<0.000000e+00> : vector<192x128xf32>
    %34 = tpu.matmul %31, %33, %cst_18 {dimension_numbers = #tpu.dot_dimension_numbers<[1], [0], [0], [1], [0, 0, 1, 1], [], []>} : vector<192x128xf32>, vector<128x128xf32>, vector<192x128xf32> -> vector<192x128xf32>
    %35 = arith.addf %26, %34 : vector<192x128xf32>
    %c0_19 = arith.constant 0 : index
    %c0_20 = arith.constant 0 : index
    %36 = vector.load %arg3[%c0_19, %c0_20] : memref<1x128xf32, #tpu.memory_space<vmem>>, vector<1x128xf32>
    %37 = vector.broadcast %36 : vector<1x128xf32> to vector<192x128xf32>
    %38 = arith.addf %35, %37 : vector<192x128xf32>
    %cst_21 = arith.constant 0.000000e+00 : f32
    %39 = vector.broadcast %cst_21 : f32 to vector<192x128xf32>
    %40 = arith.maximumf %38, %39 : vector<192x128xf32>
    %c0_22 = arith.constant 0 : index
    %c0_23 = arith.constant 0 : index
    %41 = vector.load %arg4[%c0_22, %c0_23] : memref<128x128xf32, #tpu.memory_space<vmem>>, vector<128x128xf32>
    %cst_24 = arith.constant dense<0.000000e+00> : vector<192x128xf32>
    %42 = tpu.matmul %40, %41, %cst_24 {dimension_numbers = #tpu.dot_dimension_numbers<[1], [0], [0], [1], [0, 0, 1, 1], [], []>} : vector<192x128xf32>, vector<128x128xf32>, vector<192x128xf32> -> vector<192x128xf32>
    %c0_25 = arith.constant 0 : index
    %c0_26 = arith.constant 0 : index
    %43 = vector.load %arg5[%c0_25, %c0_26] : memref<1x128xf32, #tpu.memory_space<vmem>>, vector<1x128xf32>
    %44 = vector.broadcast %43 : vector<1x128xf32> to vector<192x128xf32>
    %45 = arith.addf %42, %44 : vector<192x128xf32>
    %cst_27 = arith.constant dense<0xFF800000> : vector<192xf32>
    %46 = vector.multi_reduction <maximumf>, %45, %cst_27 [1] : vector<192x128xf32> to vector<192xf32>
    %47 = vector.shape_cast %46 : vector<192xf32> to vector<192x1xf32>
    %48 = vector.broadcast %47 : vector<192x1xf32> to vector<192x128xf32>
    %49 = arith.subf %45, %48 : vector<192x128xf32>
    %50 = math.exp %49 : vector<192x128xf32>
    %cst_28 = arith.constant dense<0.000000e+00> : vector<192xf32>
    %51 = vector.multi_reduction <add>, %50, %cst_28 [1] : vector<192x128xf32> to vector<192xf32>
    %52 = vector.shape_cast %51 : vector<192xf32> to vector<192x1xf32>
    %53 = math.log %52 : vector<192x1xf32>
    %54 = vector.broadcast %53 : vector<192x1xf32> to vector<192x128xf32>
    %55 = arith.subf %49, %54 : vector<192x128xf32>
    %c0_29 = arith.constant 0 : index
    %c0_30 = arith.constant 0 : index
    %56 = vector.load %arg6[%c0_29, %c0_30] : memref<192x128xf32, #tpu.memory_space<vmem>>, vector<192x128xf32>
    tpu.vector_store %arg6[%c0_29, %c0_30], %55 {strides = array<i32>} : memref<192x128xf32, #tpu.memory_space<vmem>>, vector<192x128xf32>,
    return
  }
  func.func @transform_0(%arg0: i32) -> (i32, i32) {
    %c0_i32 = arith.constant 0 : i32
    %c0_i32_0 = arith.constant 0 : i32
    return %arg0, %c0_i32 : i32, i32
  }
  func.func @transform_1(%arg0: i32) -> (i32, i32, i32) {
    %c0_i32 = arith.constant 0 : i32
    %c0_i32_0 = arith.constant 0 : i32
    %c0_i32_1 = arith.constant 0 : i32
    %c0_i32_2 = arith.constant 0 : i32
    return %c0_i32, %c0_i32_0, %c0_i32_1 : i32, i32, i32
  }
  func.func @transform_2(%arg0: i32) -> (i32, i32) {
    %c0_i32 = arith.constant 0 : i32
    %c0_i32_0 = arith.constant 0 : i32
    %c0_i32_1 = arith.constant 0 : i32
    return %c0_i32, %c0_i32_0 : i32, i32
  }
  func.func @transform_3(%arg0: i32) -> (i32, i32) {
    %c0_i32 = arith.constant 0 : i32
    %c0_i32_0 = arith.constant 0 : i32
    %c0_i32_1 = arith.constant 0 : i32
    return %c0_i32, %c0_i32_0 : i32, i32
  }
  func.func @transform_4(%arg0: i32) -> (i32, i32) {
    %c0_i32 = arith.constant 0 : i32
    %c0_i32_0 = arith.constant 0 : i32
    %c0_i32_1 = arith.constant 0 : i32
    return %c0_i32, %c0_i32_0 : i32, i32
  }
  func.func @transform_5(%arg0: i32) -> (i32, i32) {
    %c0_i32 = arith.constant 0 : i32
    %c0_i32_0 = arith.constant 0 : i32
    return %arg0, %c0_i32 : i32, i32
  }
}

</mosaic_0001>

<llo_original>
// kernel: tpu_custom_call.1
$region0: #{tpu_custom_call.1}
  #allocation0 [shape = 'u32[]', space=smem, size = 0x4, offset = 0x4, fixed_abs, tag = 'smem constant byte address 0x4 - core index']
  #allocation1 [shape = 'u32[144,128]{1,0:T(1,128)}', space=vmem, size = 0x12000, scoped, tag = 'internal scratch']
  %s0 = inlined_call_operand.vmem [shape: s32[384,4], index: 0, kind: input, shape index: {}]
  %s1 = inlined_call_operand.hbm [shape: f32[4,128,128], index: 1, kind: input, shape index: {}]
  %s2 = inlined_call_operand.vmem [shape: f32[1,128], index: 2, kind: input, shape index: {}]
  %s3 = inlined_call_operand.vmem [shape: f32[128,128], index: 3, kind: input, shape index: {}]
  %s4 = inlined_call_operand.vmem [shape: f32[1,128], index: 4, kind: input, shape index: {}]
  %s5 = inlined_call_operand.hbm [shape: f32[384,128], index: 5, kind: output, shape index: {}]
  %s6 = sld [smem:[#allocation0]]
  $region57: #{tpu_custom_call.1} parent=0
    _
  %s8 = ssub.s32 1, %s6
  %s9 = scalar_select 0, %s8, %s6
  $region1: #{tpu_custom_call.1} parent=0
    #allocation2 [shape = 'u8[262144]{0}', space=vmem, size = 0x40000, scoped, tag = 'input window, operand 1, single buffered']
    #allocation3 [shape = 's32[2]{0}', space=sflag, size = 0x8, scoped, tag = 'scoped memory for tpu_custom_call.1']
    #allocation4 [shape = 's32[2]{0}', space=sflag, size = 0x8, scoped, tag = 'scoped memory for tpu_custom_call.1']
    #allocation5 [shape = 'u8[196608]{0}', space=vmem, size = 0x30000, scoped, tag = 'output window, operand 0']
    %10 = vsyncpa [#allocation3], 0
    %11 = vsyncpa [#allocation4], 0
    %s12 = scalar_lea.sflag [#allocation4], 1
    %13 = vsyncpa %s12, 0
    loop: start=0, step=1, limit=4
    $region2: #{tpu_custom_call.1} parent=1 // loop_pre_header
      _
    $region3: #{tpu_custom_call.1} parent=1 // loop_header
      %s15 = sphi 0, %s19
      %p16 = scmp.ge.s32.totalorder %s15, 4
      %s25 = sphi 0, %s27
      %s28 = sphi 0, %s25
      %s29 = sphi 0, %s28
      %s45 = sphi 0, %s29
      %s49 = sphi 0, %s49
      %s51 = sphi 0, %s49
      %s52 = sphi 0, %s51
      %s66 = sphi 0, %s52
      %s70 = sphi 0, %s70
      %s72 = sphi 0, %s70
      %s73 = sphi 0, %s72
      %s87 = sphi 0, %s73
      %s91 = sphi 0, %s91
      %s93 = sphi 0, %s91
      %s94 = sphi 0, %s93
      %s108 = sphi 0, %s94
      %s112 = sphi 0, %s112
      %s114 = sphi 0, %s112
      %s115 = sphi 0, %s114
      %s129 = sphi 0, %s115
      %s135 = sphi 0, %s137
      %s138 = sphi 0, %s135
      %s139 = sphi 0, %s138
      %s155 = sphi 0, %s139
    $region4: #{tpu_custom_call.1} parent=1 // loop_header_branch
      %18 = sbr.rel (%p16) target = $region8
    $region5: #{tpu_custom_call.1} parent=1 // loop_body
      %s20 = ssub.s32 %s15, 1
      %s21 = ssub.s32 %s15, 2
      %s22 = sadd.s32 %s15, 1
      %s23 = ssub.s32 %s15, %s22
      %p24 = scmp.eq.s32.totalorder %s23, 0
      %s26 = sadd.s32 %s25, 1
      %s27 = scalar_select %p24, %s25, %s26
      %p30 = pneg %p24
      %p31 = scmp.eq.s32.totalorder %s15, 1
      %p32 = por %p30, %p31
      %p33 = scmp.ne.s32.totalorder %s25, %s28
      %p34 = scmp.eq.s32.totalorder %s15, 0
      %p35 = por %p33, %p34
      %p36 = scmp.ne.s32.totalorder %s25, %s28
      %p37 = scmp.eq.s32.totalorder %s20, 1
      %p38 = por %p36, %p37
      %p39 = scmp.ne.s32.totalorder %s28, %s29
      %p40 = scmp.eq.s32.totalorder %s20, 0
      %p41 = por %p39, %p40
      %p42 = scmp.ne.s32.totalorder %s28, %s29
      %p43 = scmp.eq.s32.totalorder %s21, 1
      %p44 = por %p42, %p43
      %p46 = scmp.ne.s32.totalorder %s29, %s45
      %p47 = scmp.eq.s32.totalorder %s21, 0
      %p48 = por %p46, %p47
      %s50 = sadd.s32 %s49, 1
      %p53 = scmp.eq.s32.totalorder %s15, 1
      %p54 = scmp.ne.s32.totalorder %s49, %s51
      %p55 = scmp.eq.s32.totalorder %s15, 0
      %p56 = por %p54, %p55
      %p57 = scmp.ne.s32.totalorder %s49, %s51
      %p58 = scmp.eq.s32.totalorder %s20, 1
      %p59 = por %p57, %p58
      %p60 = scmp.ne.s32.totalorder %s51, %s52
      %p61 = scmp.eq.s32.totalorder %s20, 0
      %p62 = por %p60, %p61
      %p63 = scmp.ne.s32.totalorder %s51, %s52
      %p64 = scmp.eq.s32.totalorder %s21, 1
      %p65 = por %p63, %p64
      %p67 = scmp.ne.s32.totalorder %s52, %s66
      %p68 = scmp.eq.s32.totalorder %s21, 0
      %p69 = por %p67, %p68
      %s71 = sadd.s32 %s70, 1
      %p74 = scmp.eq.s32.totalorder %s15, 1
      %p75 = scmp.ne.s32.totalorder %s70, %s72
      %p76 = scmp.eq.s32.totalorder %s15, 0
      %p77 = por %p75, %p76
      %p78 = scmp.ne.s32.totalorder %s70, %s72
      %p79 = scmp.eq.s32.totalorder %s20, 1
      %p80 = por %p78, %p79
      %p81 = scmp.ne.s32.totalorder %s72, %s73
      %p82 = scmp.eq.s32.totalorder %s20, 0
      %p83 = por %p81, %p82
      %p84 = scmp.ne.s32.totalorder %s72, %s73
      %p85 = scmp.eq.s32.totalorder %s21, 1
      %p86 = por %p84, %p85
      %p88 = scmp.ne.s32.totalorder %s73, %s87
      %p89 = scmp.eq.s32.totalorder %s21, 0
      %p90 = por %p88, %p89
      %s92 = sadd.s32 %s91, 1
      %p95 = scmp.eq.s32.totalorder %s15, 1
      %p96 = scmp.ne.s32.totalorder %s91, %s93
      %p97 = scmp.eq.s32.totalorder %s15, 0
      %p98 = por %p96, %p97
      %p99 = scmp.ne.s32.totalorder %s91, %s93
      %p100 = scmp.eq.s32.totalorder %s20, 1
      %p101 = por %p99, %p100
      %p102 = scmp.ne.s32.totalorder %s93, %s94
      %p103 = scmp.eq.s32.totalorder %s20, 0
      %p104 = por %p102, %p103
      %p105 = scmp.ne.s32.totalorder %s93, %s94
      %p106 = scmp.eq.s32.totalorder %s21, 1
      %p107 = por %p105, %p106
      %p109 = scmp.ne.s32.totalorder %s94, %s108
      %p110 = scmp.eq.s32.totalorder %s21, 0
      %p111 = por %p109, %p110
      %s113 = sadd.s32 %s112, 1
      %p116 = scmp.eq.s32.totalorder %s15, 1
      %p117 = scmp.ne.s32.totalorder %s112, %s114
      %p118 = scmp.eq.s32.totalorder %s15, 0
      %p119 = por %p117, %p118
      %p120 = scmp.ne.s32.totalorder %s112, %s114
      %p121 = scmp.eq.s32.totalorder %s20, 1
      %p122 = por %p120, %p121
      %p123 = scmp.ne.s32.totalorder %s114, %s115
      %p124 = scmp.eq.s32.totalorder %s20, 0
      %p125 = por %p123, %p124
      %p126 = scmp.ne.s32.totalorder %s114, %s115
      %p127 = scmp.eq.s32.totalorder %s21, 1
      %p128 = por %p126, %p127
      %p130 = scmp.ne.s32.totalorder %s115, %s129
      %p131 = scmp.eq.s32.totalorder %s21, 0
      %p132 = por %p130, %p131
      %s133 = ssub.s32 %s15, %s22
      %p134 = scmp.eq.s32.totalorder %s133, 0
      %s136 = sadd.s32 %s135, 1
      %s137 = scalar_select %p134, %s135, %s136
      %p140 = pneg %p134
      %p141 = scmp.eq.s32.totalorder %s15, 1
      %p142 = por %p140, %p141
      %p143 = scmp.ne.s32.totalorder %s135, %s138
      %p144 = scmp.eq.s32.totalorder %s15, 0
      %p145 = por %p143, %p144
      %p146 = scmp.ne.s32.totalorder %s135, %s138
      %p147 = scmp.eq.s32.totalorder %s20, 1
      %p148 = por %p146, %p147
      %p149 = scmp.ne.s32.totalorder %s138, %s139
      %p150 = scmp.eq.s32.totalorder %s20, 0
      %p151 = por %p149, %p150
      %p152 = scmp.ne.s32.totalorder %s138, %s139
      %p153 = scmp.eq.s32.totalorder %s21, 1
      %p154 = por %p152, %p153
      %p156 = scmp.ne.s32.totalorder %s139, %s155
      %p157 = scmp.eq.s32.totalorder %s21, 0
      %p158 = por %p156, %p157
      %p159 = scmp.le.s32.totalorder 1, %s15
      %p160 = scmp.lt.s32.totalorder %s15, 3
      %p161 = pnand %p159, %p160
      %p162 = pneg %p161
      // Predicated region
      $region9: #{tpu_custom_call.1} parent=5 // pred_check
        _
      $region10: #{tpu_custom_call.1} parent=5 // pred_check_branch
        %164 = sbr.rel (%p161) target = $region12
      $region11: #{tpu_custom_call.1} parent=5 // pred_region
        %s165 = ssub.s32 %s15, 1
        // Predicated region
        $region13: #{tpu_custom_call.1} parent=11 // pred_check
          %p166 = pneg %p62
        $region14: #{tpu_custom_call.1} parent=11 // pred_check_branch
          %168 = sbr.rel (%p166) target = $region16
        $region15: #{tpu_custom_call.1} parent=11 // pred_region
          %s170 = ssub.s32 8192, 8192
          %171 = vsyncadd [#allocation3], %s170
          %s172 = sshll.u32 [#allocation2], 4
          %s173 = int_to_ptr.vmem [resolvable:$true] %s172
          %178 = dma.hbm_to_vmem [thread:$0]  %s1, 8192, %s173, [#allocation3], 128, 128, 8
        $region16: #{tpu_custom_call.1} parent=11 // pred_fallthru
          _
        // Predicated region
        $region17: #{tpu_custom_call.1} parent=11 // pred_check
          %p179 = pneg %p83
        $region18: #{tpu_custom_call.1} parent=11 // pred_check_branch
          %181 = sbr.rel (%p179) target = $region20
        $region19: #{tpu_custom_call.1} parent=11 // pred_region
          _
        $region20: #{tpu_custom_call.1} parent=11 // pred_fallthru
          _
        // Predicated region
        $region21: #{tpu_custom_call.1} parent=11 // pred_check
          %p182 = pneg %p104
        $region22: #{tpu_custom_call.1} parent=11 // pred_check_branch
          %184 = sbr.rel (%p182) target = $region24
        $region23: #{tpu_custom_call.1} parent=11 // pred_region
          _
        $region24: #{tpu_custom_call.1} parent=11 // pred_fallthru
          _
        // Predicated region
        $region25: #{tpu_custom_call.1} parent=11 // pred_check
          %p185 = pneg %p125
        $region26: #{tpu_custom_call.1} parent=11 // pred_check_branch
          %187 = sbr.rel (%p185) target = $region28
        $region27: #{tpu_custom_call.1} parent=11 // pred_region
          _
        $region28: #{tpu_custom_call.1} parent=11 // pred_fallthru
          _
      $region12: #{tpu_custom_call.1} parent=5 // pred_fallthru
        _
      %p188 = scmp.lt.s32.totalorder %s15, 2
      // Predicated region
      $region29: #{tpu_custom_call.1} parent=5 // pred_check
        %p189 = pneg %p188
      $region30: #{tpu_custom_call.1} parent=5 // pred_check_branch
        %191 = sbr.rel (%p189) target = $region32
      $region31: #{tpu_custom_call.1} parent=5 // pred_region
        // Predicated region
        $region33: #{tpu_custom_call.1} parent=31 // pred_check
          %p192 = pneg %p35
        $region34: #{tpu_custom_call.1} parent=31 // pred_check_branch
          %194 = sbr.rel (%p192) target = $region36
        $region35: #{tpu_custom_call.1} parent=31 // pred_region
          %s195 = smul.u32 24, %s15
          %p196 = scmp.lt.s32.totalorder %s195, 47
          %s197 = scalar_select %p196, %s195, 47
          %s198 = smul.addr %s197, 8
          %s199 = scalar_lea.vmem %s0, %s198
          %s200 = smul.u32 24, %s15
        $region36: #{tpu_custom_call.1} parent=31 // pred_fallthru
          _
      $region32: #{tpu_custom_call.1} parent=5 // pred_fallthru
        _
      %p201 = scmp.le.s32.totalorder 1, %s15
      %p202 = scmp.lt.s32.totalorder %s15, 3
      %p203 = pnand %p201, %p202
      %p204 = pneg %p203
      // Predicated region
      $region37: #{tpu_custom_call.1} parent=5 // pred_check
        _
      $region38: #{tpu_custom_call.1} parent=5 // pred_check_branch
        %206 = sbr.rel (%p203) target = $region40
      $region39: #{tpu_custom_call.1} parent=5 // pred_region
        %s207 = ssub.s32 %s15, 1
        // Predicated region
        $region41: #{tpu_custom_call.1} parent=39 // pred_check
          %p208 = pneg %p62
        $region42: #{tpu_custom_call.1} parent=39 // pred_check_branch
          %210 = sbr.rel (%p208) target = $region44
        $region43: #{tpu_custom_call.1} parent=39 // pred_region
          %211 = dma.done [#allocation3], 8192
        $region44: #{tpu_custom_call.1} parent=39 // pred_fallthru
          _
        %s212 = smul.u32 24, %s20
        %p213 = scmp.lt.s32.totalorder %s212, 47
        %s214 = scalar_select %p213, %s212, 47
        %s215 = smul.addr %s214, 8
        %s216 = scalar_lea.vmem %s0, %s215
        %p217 = pneg %p41
        %p218 = pneg %p38
        %p219 = pneg %p62
        %p220 = pneg %p59
        %p221 = pneg %p83
        %p222 = pneg %p80
        %p223 = pneg %p104
        %p224 = pneg %p101
        %p225 = pneg %p125
        %p226 = pneg %p122
        %p227 = pneg %p151
        %p228 = pneg %p148
        %s229 = sand.u32 %s138, 1
        %s230 = scalar_lea.sflag [#allocation4], %s229
        %s231 = sand.u32 %s138, 1
        %s232 = smul.addr %s231, 192
        %s233 = scalar_lea.vmem [#allocation5], %s232
        %s234 = smul.u32 24, %s20
        %p235 = scmp.lt.s32.totalorder %s234, 47
        %s236 = scalar_select %p235, %s234, 47
        %s237 = smul.addr %s236, 8
        %s238 = scalar_lea.vmem %s0, %s237
        %s239 = smul.u32 24, %s20
        %s240 = smul.u32 24, %s20
        %v241 = vlaneseq
        %v242 = vand.u32 %v241, 127
        %v243 = vld [vmem:[%s238] sm:$0xff]
        %v244 = vld [vmem:[%s238 + $0x8] sm:$0xff]
        %v245 = vld [vmem:[%s238 + $0x10] sm:$0xff]
        %v246 = vld [vmem:[%s238 + $0x18] sm:$0xff]
        %v247 = vld [vmem:[%s238 + $0x20] sm:$0xff]
        %v248 = vld [vmem:[%s238 + $0x28] sm:$0xff]
        %v249 = vld [vmem:[%s238 + $0x30] sm:$0xff]
        %v250 = vld [vmem:[%s238 + $0x38] sm:$0xff]
        %v251 = vld [vmem:[%s238 + $0x40] sm:$0xff]
        %v252 = vld [vmem:[%s238 + $0x48] sm:$0xff]
        %v253 = vld [vmem:[%s238 + $0x50] sm:$0xff]
        %v254 = vld [vmem:[%s238 + $0x58] sm:$0xff]
        %v255 = vld [vmem:[%s238 + $0x60] sm:$0xff]
        %v256 = vld [vmem:[%s238 + $0x68] sm:$0xff]
        %v257 = vld [vmem:[%s238 + $0x70] sm:$0xff]
        %v258 = vld [vmem:[%s238 + $0x78] sm:$0xff]
        %v259 = vld [vmem:[%s238 + $0x80] sm:$0xff]
        %v260 = vld [vmem:[%s238 + $0x88] sm:$0xff]
        %v261 = vld [vmem:[%s238 + $0x90] sm:$0xff]
        %v262 = vld [vmem:[%s238 + $0x98] sm:$0xff]
        %v263 = vld [vmem:[%s238 + $0xa0] sm:$0xff]
        %v264 = vld [vmem:[%s238 + $0xa8] sm:$0xff]
        %v265 = vld [vmem:[%s238 + $0xb0] sm:$0xff]
        %v266 = vld [vmem:[%s238 + $0xb8] sm:$0xff]
        %267 = vset.pattern.permute.xlu0 0
        %268 = vperm.xlu0 %267, %v243
        %v269 = vpop.permute.xlu0 %268
        %270 = vset.pattern.permute.xlu0 0
        %271 = vperm.xlu0 %270, %v244
        %v272 = vpop.permute.xlu0 %271
        %273 = vset.pattern.permute.xlu0 0
        %274 = vperm.xlu0 %273, %v245
        %v275 = vpop.permute.xlu0 %274
        %276 = vset.pattern.permute.xlu0 0
        %277 = vperm.xlu0 %276, %v246
        %v278 = vpop.permute.xlu0 %277
        %279 = vset.pattern.permute.xlu0 0
        %280 = vperm.xlu0 %279, %v247
        %v281 = vpop.permute.xlu0 %280
        %282 = vset.pattern.permute.xlu0 0
        %283 = vperm.xlu0 %282, %v248
        %v284 = vpop.permute.xlu0 %283
        %285 = vset.pattern.permute.xlu0 0
        %286 = vperm.xlu0 %285, %v249
        %v287 = vpop.permute.xlu0 %286
        %288 = vset.pattern.permute.xlu0 0
        %289 = vperm.xlu0 %288, %v250
        %v290 = vpop.permute.xlu0 %289
        %291 = vset.pattern.permute.xlu0 0
        %292 = vperm.xlu0 %291, %v251
        %v293 = vpop.permute.xlu0 %292
        %294 = vset.pattern.permute.xlu0 0
        %295 = vperm.xlu0 %294, %v252
        %v296 = vpop.permute.xlu0 %295
        %297 = vset.pattern.permute.xlu0 0
        %298 = vperm.xlu0 %297, %v253
        %v299 = vpop.permute.xlu0 %298
        %300 = vset.pattern.permute.xlu0 0
        %301 = vperm.xlu0 %300, %v254
        %v302 = vpop.permute.xlu0 %301
        %303 = vset.pattern.permute.xlu0 0
        %304 = vperm.xlu0 %303, %v255
        %v305 = vpop.permute.xlu0 %304
        %306 = vset.pattern.permute.xlu0 0
        %307 = vperm.xlu0 %306, %v256
        %v308 = vpop.permute.xlu0 %307
        %309 = vset.pattern.permute.xlu0 0
        %310 = vperm.xlu0 %309, %v257
        %v311 = vpop.permute.xlu0 %310
        %312 = vset.pattern.permute.xlu0 0
        %313 = vperm.xlu0 %312, %v258
        %v314 = vpop.permute.xlu0 %313
        %315 = vset.pattern.permute.xlu0 0
        %316 = vperm.xlu0 %315, %v259
        %v317 = vpop.permute.xlu0 %316
        %318 = vset.pattern.permute.xlu0 0
        %319 = vperm.xlu0 %318, %v260
        %v320 = vpop.permute.xlu0 %319
        %321 = vset.pattern.permute.xlu0 0
        %322 = vperm.xlu0 %321, %v261
        %v323 = vpop.permute.xlu0 %322
        %324 = vset.pattern.permute.xlu0 0
        %325 = vperm.xlu0 %324, %v262
        %v326 = vpop.permute.xlu0 %325
        %327 = vset.pattern.permute.xlu0 0
        %328 = vperm.xlu0 %327, %v263
        %v329 = vpop.permute.xlu0 %328
        %330 = vset.pattern.permute.xlu0 0
        %331 = vperm.xlu0 %330, %v264
        %v332 = vpop.permute.xlu0 %331
        %333 = vset.pattern.permute.xlu0 0
        %334 = vperm.xlu0 %333, %v265
        %v335 = vpop.permute.xlu0 %334
        %336 = vset.pattern.permute.xlu0 0
        %337 = vperm.xlu0 %336, %v266
        %v338 = vpop.permute.xlu0 %337
        %vm339 = vcmp.eq.s32.totalorder %v242, %v269
        %vm340 = vcmp.eq.s32.totalorder %v242, %v272
        %vm341 = vcmp.eq.s32.totalorder %v242, %v275
        %vm342 = vcmp.eq.s32.totalorder %v242, %v278
        %vm343 = vcmp.eq.s32.totalorder %v242, %v281
        %vm344 = vcmp.eq.s32.totalorder %v242, %v284
        %vm345 = vcmp.eq.s32.totalorder %v242, %v287
        %vm346 = vcmp.eq.s32.totalorder %v242, %v290
        %vm347 = vcmp.eq.s32.totalorder %v242, %v293
        %vm348 = vcmp.eq.s32.totalorder %v242, %v296
        %vm349 = vcmp.eq.s32.totalorder %v242, %v299
        %vm350 = vcmp.eq.s32.totalorder %v242, %v302
        %vm351 = vcmp.eq.s32.totalorder %v242, %v305
        %vm352 = vcmp.eq.s32.totalorder %v242, %v308
        %vm353 = vcmp.eq.s32.totalorder %v242, %v311
        %vm354 = vcmp.eq.s32.totalorder %v242, %v314
        %vm355 = vcmp.eq.s32.totalorder %v242, %v317
        %vm356 = vcmp.eq.s32.totalorder %v242, %v320
        %vm357 = vcmp.eq.s32.totalorder %v242, %v323
        %vm358 = vcmp.eq.s32.totalorder %v242, %v326
        %vm359 = vcmp.eq.s32.totalorder %v242, %v329
        %vm360 = vcmp.eq.s32.totalorder %v242, %v332
        %vm361 = vcmp.eq.s32.totalorder %v242, %v335
        %vm362 = vcmp.eq.s32.totalorder %v242, %v338
        %v363 = vsel %vm339, 1, 0
        %v364 = vsel %vm340, 1, 0
        %v365 = vsel %vm341, 1, 0
        %v366 = vsel %vm342, 1, 0
        %v367 = vsel %vm343, 1, 0
        %v368 = vsel %vm344, 1, 0
        %v369 = vsel %vm345, 1, 0
        %v370 = vsel %vm346, 1, 0
        %v371 = vsel %vm347, 1, 0
        %v372 = vsel %vm348, 1, 0
        %v373 = vsel %vm349, 1, 0
        %v374 = vsel %vm350, 1, 0
        %v375 = vsel %vm351, 1, 0
        %v376 = vsel %vm352, 1, 0
        %v377 = vsel %vm353, 1, 0
        %v378 = vsel %vm354, 1, 0
        %v379 = vsel %vm355, 1, 0
        %v380 = vsel %vm356, 1, 0
        %v381 = vsel %vm357, 1, 0
        %v382 = vsel %vm358, 1, 0
        %v383 = vsel %vm359, 1, 0
        %v384 = vsel %vm360, 1, 0
        %v385 = vsel %vm361, 1, 0
        %v386 = vsel %vm362, 1, 0
        %v387 = vcvt.s32.f32 %v363
        %v388 = vcvt.s32.f32 %v364
        %v389 = vcvt.s32.f32 %v365
        %v390 = vcvt.s32.f32 %v366
        %v391 = vcvt.s32.f32 %v367
        %v392 = vcvt.s32.f32 %v368
        %v393 = vcvt.s32.f32 %v369
        %v394 = vcvt.s32.f32 %v370
        %v395 = vcvt.s32.f32 %v371
        %v396 = vcvt.s32.f32 %v372
        %v397 = vcvt.s32.f32 %v373
        %v398 = vcvt.s32.f32 %v374
        %v399 = vcvt.s32.f32 %v375
        %v400 = vcvt.s32.f32 %v376
        %v401 = vcvt.s32.f32 %v377
        %v402 = vcvt.s32.f32 %v378
        %v403 = vcvt.s32.f32 %v379
        %v404 = vcvt.s32.f32 %v380
        %v405 = vcvt.s32.f32 %v381
        %v406 = vcvt.s32.f32 %v382
        %v407 = vcvt.s32.f32 %v383
        %v408 = vcvt.s32.f32 %v384
        %v409 = vcvt.s32.f32 %v385
        %v410 = vcvt.s32.f32 %v386
        %v411 = vld [vmem:[#allocation2] sm:$0xff]
        %v412 = vld [vmem:[#allocation2 + $0x8] sm:$0xff]
        %v413 = vld [vmem:[#allocation2 + $0x10] sm:$0xff]
        %v414 = vld [vmem:[#allocation2 + $0x18] sm:$0xff]
        %v415 = vld [vmem:[#allocation2 + $0x20] sm:$0xff]
        %v416 = vld [vmem:[#allocation2 + $0x28] sm:$0xff]
        %v417 = vld [vmem:[#allocation2 + $0x30] sm:$0xff]
        %v418 = vld [vmem:[#allocation2 + $0x38] sm:$0xff]
        %v419 = vld [vmem:[#allocation2 + $0x40] sm:$0xff]
        %v420 = vld [vmem:[#allocation2 + $0x48] sm:$0xff]
        %v421 = vld [vmem:[#allocation2 + $0x50] sm:$0xff]
        %v422 = vld [vmem:[#allocation2 + $0x58] sm:$0xff]
        %v423 = vld [vmem:[#allocation2 + $0x60] sm:$0xff]
        %v424 = vld [vmem:[#allocation2 + $0x68] sm:$0xff]
        %v425 = vld [vmem:[#allocation2 + $0x70] sm:$0xff]
        %v426 = vld [vmem:[#allocation2 + $0x78] sm:$0xff]
        %427 = vset.pattern.permute.xlu0 1
        %428 = vperm.xlu0 %427, %v243
        %v429 = vpop.permute.xlu0 %428
        %430 = vset.pattern.permute.xlu0 1
        %431 = vperm.xlu0 %430, %v244
        %v432 = vpop.permute.xlu0 %431
        %433 = vset.pattern.permute.xlu0 1
        %434 = vperm.xlu0 %433, %v245
        %v435 = vpop.permute.xlu0 %434
        %436 = vset.pattern.permute.xlu0 1
        %437 = vperm.xlu0 %436, %v246
        %v438 = vpop.permute.xlu0 %437
        %439 = vset.pattern.permute.xlu0 1
        %440 = vperm.xlu0 %439, %v247
        %v441 = vpop.permute.xlu0 %440
        %442 = vset.pattern.permute.xlu0 1
        %443 = vperm.xlu0 %442, %v248
        %v444 = vpop.permute.xlu0 %443
        %445 = vset.pattern.permute.xlu0 1
        %446 = vperm.xlu0 %445, %v249
        %v447 = vpop.permute.xlu0 %446
        %448 = vset.pattern.permute.xlu0 1
        %449 = vperm.xlu0 %448, %v250
        %v450 = vpop.permute.xlu0 %449
        %451 = vset.pattern.permute.xlu0 1
        %452 = vperm.xlu0 %451, %v251
        %v453 = vpop.permute.xlu0 %452
        %454 = vset.pattern.permute.xlu0 1
        %455 = vperm.xlu0 %454, %v252
        %v456 = vpop.permute.xlu0 %455
        %457 = vset.pattern.permute.xlu0 1
        %458 = vperm.xlu0 %457, %v253
        %v459 = vpop.permute.xlu0 %458
        %460 = vset.pattern.permute.xlu0 1
        %461 = vperm.xlu0 %460, %v254
        %v462 = vpop.permute.xlu0 %461
        %463 = vset.pattern.permute.xlu0 1
        %464 = vperm.xlu0 %463, %v255
        %v465 = vpop.permute.xlu0 %464
        %466 = vset.pattern.permute.xlu0 1
        %467 = vperm.xlu0 %466, %v256
        %v468 = vpop.permute.xlu0 %467
        %469 = vset.pattern.permute.xlu0 1
        %470 = vperm.xlu0 %469, %v257
        %v471 = vpop.permute.xlu0 %470
        %472 = vset.pattern.permute.xlu0 1
        %473 = vperm.xlu0 %472, %v258
        %v474 = vpop.permute.xlu0 %473
        %475 = vset.pattern.permute.xlu0 1
        %476 = vperm.xlu0 %475, %v259
        %v477 = vpop.permute.xlu0 %476
        %478 = vset.pattern.permute.xlu0 1
        %479 = vperm.xlu0 %478, %v260
        %v480 = vpop.permute.xlu0 %479
        %481 = vset.pattern.permute.xlu0 1
        %482 = vperm.xlu0 %481, %v261
        %v483 = vpop.permute.xlu0 %482
        %484 = vset.pattern.permute.xlu0 1
        %485 = vperm.xlu0 %484, %v262
        %v486 = vpop.permute.xlu0 %485
        %487 = vset.pattern.permute.xlu0 1
        %488 = vperm.xlu0 %487, %v263
        %v489 = vpop.permute.xlu0 %488
        %490 = vset.pattern.permute.xlu0 1
        %491 = vperm.xlu0 %490, %v264
        %v492 = vpop.permute.xlu0 %491
        %493 = vset.pattern.permute.xlu0 1
        %494 = vperm.xlu0 %493, %v265
        %v495 = vpop.permute.xlu0 %494
        %496 = vset.pattern.permute.xlu0 1
        %497 = vperm.xlu0 %496, %v266
        %v498 = vpop.permute.xlu0 %497
        %vm499 = vcmp.eq.s32.totalorder %v242, %v429
        %vm500 = vcmp.eq.s32.totalorder %v242, %v432
        %vm501 = vcmp.eq.s32.totalorder %v242, %v435
        %vm502 = vcmp.eq.s32.totalorder %v242, %v438
        %vm503 = vcmp.eq.s32.totalorder %v242, %v441
        %vm504 = vcmp.eq.s32.totalorder %v242, %v444
        %vm505 = vcmp.eq.s32.totalorder %v242, %v447
        %vm506 = vcmp.eq.s32.totalorder %v242, %v450
        %vm507 = vcmp.eq.s32.totalorder %v242, %v453
        %vm508 = vcmp.eq.s32.totalorder %v242, %v456
        %vm509 = vcmp.eq.s32.totalorder %v242, %v459
        %vm510 = vcmp.eq.s32.totalorder %v242, %v462
        %vm511 = vcmp.eq.s32.totalorder %v242, %v465
        %vm512 = vcmp.eq.s32.totalorder %v242, %v468
        %vm513 = vcmp.eq.s32.totalorder %v242, %v471
        %vm514 = vcmp.eq.s32.totalorder %v242, %v474
        %vm515 = vcmp.eq.s32.totalorder %v242, %v477
        %vm516 = vcmp.eq.s32.totalorder %v242, %v480
        %vm517 = vcmp.eq.s32.totalorder %v242, %v483
        %vm518 = vcmp.eq.s32.totalorder %v242, %v486
        %vm519 = vcmp.eq.s32.totalorder %v242, %v489
        %vm520 = vcmp.eq.s32.totalorder %v242, %v492
        %vm521 = vcmp.eq.s32.totalorder %v242, %v495
        %vm522 = vcmp.eq.s32.totalorder %v242, %v498
        %v523 = vsel %vm499, 1, 0
        %v524 = vsel %vm500, 1, 0
        %v525 = vsel %vm501, 1, 0
        %v526 = vsel %vm502, 1, 0
        %v527 = vsel %vm503, 1, 0
        %v528 = vsel %vm504, 1, 0
        %v529 = vsel %vm505, 1, 0
        %v530 = vsel %vm506, 1, 0
        %v531 = vsel %vm507, 1, 0
        %v532 = vsel %vm508, 1, 0
        %v533 = vsel %vm509, 1, 0
        %v534 = vsel %vm510, 1, 0
        %v535 = vsel %vm511, 1, 0
        %v536 = vsel %vm512, 1, 0
        %v537 = vsel %vm513, 1, 0
        %v538 = vsel %vm514, 1, 0
        %v539 = vsel %vm515, 1, 0
        %v540 = vsel %vm516, 1, 0
        %v541 = vsel %vm517, 1, 0
        %v542 = vsel %vm518, 1, 0
        %v543 = vsel %vm519, 1, 0
        %v544 = vsel %vm520, 1, 0
        %v545 = vsel %vm521, 1, 0
        %v546 = vsel %vm522, 1, 0
        %v547 = vcvt.s32.f32 %v523
        %v548 = vcvt.s32.f32 %v524
        %v549 = vcvt.s32.f32 %v525
        %v550 = vcvt.s32.f32 %v526
        %v551 = vcvt.s32.f32 %v527
        %v552 = vcvt.s32.f32 %v528
        %v553 = vcvt.s32.f32 %v529
        %v554 = vcvt.s32.f32 %v530
        %v555 = vcvt.s32.f32 %v531
        %v556 = vcvt.s32.f32 %v532
        %v557 = vcvt.s32.f32 %v533
        %v558 = vcvt.s32.f32 %v534
        %v559 = vcvt.s32.f32 %v535
        %v560 = vcvt.s32.f32 %v536
        %v561 = vcvt.s32.f32 %v537
        %v562 = vcvt.s32.f32 %v538
        %v563 = vcvt.s32.f32 %v539
        %v564 = vcvt.s32.f32 %v540
        %v565 = vcvt.s32.f32 %v541
        %v566 = vcvt.s32.f32 %v542
        %v567 = vcvt.s32.f32 %v543
        %v568 = vcvt.s32.f32 %v544
        %v569 = vcvt.s32.f32 %v545
        %v570 = vcvt.s32.f32 %v546
        %s571 = scalar_lea.vmem [#allocation2], 128
        %v572 = vld [vmem:[%s571] sm:$0xff]
        %v573 = vld [vmem:[%s571 + $0x8] sm:$0xff]
        %v574 = vld [vmem:[%s571 + $0x10] sm:$0xff]
        %v575 = vld [vmem:[%s571 + $0x18] sm:$0xff]
        %v576 = vld [vmem:[%s571 + $0x20] sm:$0xff]
        %v577 = vld [vmem:[%s571 + $0x28] sm:$0xff]
        %v578 = vld [vmem:[%s571 + $0x30] sm:$0xff]
        %v579 = vld [vmem:[%s571 + $0x38] sm:$0xff]
        %v580 = vld [vmem:[%s571 + $0x40] sm:$0xff]
        %v581 = vld [vmem:[%s571 + $0x48] sm:$0xff]
        %v582 = vld [vmem:[%s571 + $0x50] sm:$0xff]
        %v583 = vld [vmem:[%s571 + $0x58] sm:$0xff]
        %v584 = vld [vmem:[%s571 + $0x60] sm:$0xff]
        %v585 = vld [vmem:[%s571 + $0x68] sm:$0xff]
        %v586 = vld [vmem:[%s571 + $0x70] sm:$0xff]
        %v587 = vld [vmem:[%s571 + $0x78] sm:$0xff]
        %588 = vmatprep.subr.mxu0 0.0
        %589 = vmatpush1.msra.mxu0 %v572
        %590 = vmatprep.subr.mxu0 0.0
        %591 = vmatpush1.msra.mxu0 %v573
        %592 = vmatprep.subr.mxu0 0.0
        %593 = vmatpush1.msra.mxu0 %v574
        %594 = vmatprep.subr.mxu0 0.0
        %595 = vmatpush1.msra.mxu0 %v575
        %596 = vmatprep.subr.mxu0 0.0
        %597 = vmatpush1.msra.mxu0 %v576
        %598 = vmatprep.subr.mxu0 0.0
        %599 = vmatpush1.msra.mxu0 %v577
        %600 = vmatprep.subr.mxu0 0.0
        %601 = vmatpush1.msra.mxu0 %v578
        %602 = vmatprep.subr.mxu0 0.0
        %603 = vmatpush1.msra.mxu0 %v579
        %604 = vmatprep.subr.mxu0 0.0
        %605 = vmatpush1.msra.mxu0 %v580
        %606 = vmatprep.subr.mxu0 0.0
        %607 = vmatpush1.msra.mxu0 %v581
        %608 = vmatprep.subr.mxu0 0.0
        %609 = vmatpush1.msra.mxu0 %v582
        %610 = vmatprep.subr.mxu0 0.0
        %611 = vmatpush1.msra.mxu0 %v583
        %612 = vmatprep.subr.mxu0 0.0
        %613 = vmatpush1.msra.mxu0 %v584
        %614 = vmatprep.subr.mxu0 0.0
        %615 = vmatpush1.msra.mxu0 %v585
        %616 = vmatprep.subr.mxu0 0.0
        %617 = vmatpush1.msra.mxu0 %v586
        %618 = vmatprep.subr.mxu0 0.0
        %619 = vmatpush1.msra.mxu0 %v587
        %620 = vmatprep.subr.mxu0 0.0
        %621 = vmatpush1.msra.mxu0 0.0
        %622 = vmatprep.subr.mxu0 0.0
        %623 = vmatpush1.msra.mxu0 0.0
        %624 = vmatprep.subr.mxu0 0.0
        %625 = vmatpush1.msra.mxu0 0.0
        %626 = vmatprep.subr.mxu0 0.0
        %627 = vmatpush1.msra.mxu0 0.0
        %628 = vmatprep.subr.mxu0 0.0
        %629 = vmatpush1.msra.mxu0 0.0
        %630 = vmatprep.subr.mxu0 0.0
        %631 = vmatpush1.msra.mxu0 0.0
        %632 = vmatprep.subr.mxu0 0.0
        %633 = vmatpush1.msra.mxu0 0.0
        %634 = vmatprep.subr.mxu0 0.0
        %635 = vmatpush1.msra.mxu0 0.0
        %636 = vmatprep.subr.mxu0 0.0
        %637 = vmatpush1.msra.mxu0 0.0
        %638 = vmatprep.subr.mxu0 0.0
        %639 = vmatpush1.msra.mxu0 0.0
        %640 = vmatprep.subr.mxu0 0.0
        %641 = vmatpush1.msra.mxu0 0.0
        %642 = vmatprep.subr.mxu0 0.0
        %643 = vmatpush1.msra.mxu0 0.0
        %644 = vmatprep.subr.mxu0 0.0
        %645 = vmatpush1.msra.mxu0 0.0
        %646 = vmatprep.subr.mxu0 0.0
        %647 = vmatpush1.msra.mxu0 0.0
        %648 = vmatprep.subr.mxu0 0.0
        %649 = vmatpush1.msra.mxu0 0.0
        %650 = vmatprep.subr.mxu0 0.0
        %651 = vmatpush1.msra.mxu0 0.0
        %652 = vmatprep.mubr.f32.mxu0 0.0
        %653 = vmatmul.mubr.f32.gmra.mrb[0].mxu0 %v547
        %v654 = vpop.f32.mrb[0].mxu0
        %v655 = vadd.f32 0.0, %v654
        %v656 = vpop.f32.mrb[0].mxu0
        %657 = vmatprep.mubr.f32.mxu0 0.0
        %658 = vmatmul.mubr.f32.gmra.mrb[0].mxu0 %v548
        %v659 = vpop.f32.mrb[0].mxu0
        %v660 = vadd.f32 0.0, %v659
        %v661 = vpop.f32.mrb[0].mxu0
        %662 = vmatprep.mubr.f32.mxu0 0.0
        %663 = vmatmul.mubr.f32.gmra.mrb[0].mxu0 %v549
        %v664 = vpop.f32.mrb[0].mxu0
        %v665 = vadd.f32 0.0, %v664
        %v666 = vpop.f32.mrb[0].mxu0
        %667 = vmatprep.mubr.f32.mxu0 0.0
        %668 = vmatmul.mubr.f32.gmra.mrb[0].mxu0 %v550
        %v669 = vpop.f32.mrb[0].mxu0
        %v670 = vadd.f32 0.0, %v669
        %v671 = vpop.f32.mrb[0].mxu0
        %672 = vmatprep.mubr.f32.mxu0 0.0
        %673 = vmatmul.mubr.f32.gmra.mrb[0].mxu0 %v551
        %v674 = vpop.f32.mrb[0].mxu0
        %v675 = vadd.f32 0.0, %v674
        %v676 = vpop.f32.mrb[0].mxu0
        %677 = vmatprep.mubr.f32.mxu0 0.0
        %678 = vmatmul.mubr.f32.gmra.mrb[0].mxu0 %v552
        %v679 = vpop.f32.mrb[0].mxu0
        %v680 = vadd.f32 0.0, %v679
        %v681 = vpop.f32.mrb[0].mxu0
        %682 = vmatprep.mubr.f32.mxu0 0.0
        %683 = vmatmul.mubr.f32.gmra.mrb[0].mxu0 %v553
        %v684 = vpop.f32.mrb[0].mxu0
        %v685 = vadd.f32 0.0, %v684
        %v686 = vpop.f32.mrb[0].mxu0
        %687 = vmatprep.mubr.f32.mxu0 0.0
        %688 = vmatmul.mubr.f32.gmra.mrb[0].mxu0 %v554
        %v689 = vpop.f32.mrb[0].mxu0
        %v690 = vadd.f32 0.0, %v689
        %v691 = vpop.f32.mrb[0].mxu0
        %692 = vmatprep.mubr.f32.mxu0 0.0
        %693 = vmatmul.mubr.f32.gmra.mrb[0].mxu0 %v555
        %v694 = vpop.f32.mrb[0].mxu0
        %v695 = vadd.f32 0.0, %v694
        %v696 = vpop.f32.mrb[0].mxu0
        %697 = vmatprep.mubr.f32.mxu0 0.0
        %698 = vmatmul.mubr.f32.gmra.mrb[0].mxu0 %v556
        %v699 = vpop.f32.mrb[0].mxu0
        %v700 = vadd.f32 0.0, %v699
        %v701 = vpop.f32.mrb[0].mxu0
        %702 = vmatprep.mubr.f32.mxu0 0.0
        %703 = vmatmul.mubr.f32.gmra.mrb[0].mxu0 %v557
        %v704 = vpop.f32.mrb[0].mxu0
        %v705 = vadd.f32 0.0, %v704
        %v706 = vpop.f32.mrb[0].mxu0
        %707 = vmatprep.mubr.f32.mxu0 0.0
        %708 = vmatmul.mubr.f32.gmra.mrb[0].mxu0 %v558
        %v709 = vpop.f32.mrb[0].mxu0
        %v710 = vadd.f32 0.0, %v709
        %v711 = vpop.f32.mrb[0].mxu0
        %712 = vmatprep.mubr.f32.mxu0 0.0
        %713 = vmatmul.mubr.f32.gmra.mrb[0].mxu0 %v559
        %v714 = vpop.f32.mrb[0].mxu0
        %v715 = vadd.f32 0.0, %v714
        %v716 = vpop.f32.mrb[0].mxu0
        %717 = vmatprep.mubr.f32.mxu0 0.0
        %718 = vmatmul.mubr.f32.gmra.mrb[0].mxu0 %v560
        %v719 = vpop.f32.mrb[0].mxu0
        %v720 = vadd.f32 0.0, %v719
        %v721 = vpop.f32.mrb[0].mxu0
        %722 = vmatprep.mubr.f32.mxu0 0.0
        %723 = vmatmul.mubr.f32.gmra.mrb[0].mxu0 %v561
        %v724 = vpop.f32.mrb[0].mxu0
        %v725 = vadd.f32 0.0, %v724
        %v726 = vpop.f32.mrb[0].mxu0
        %727 = vmatprep.mubr.f32.mxu0 0.0
        %728 = vmatmul.mubr.f32.gmra.mrb[0].mxu0 %v562
        %v729 = vpop.f32.mrb[0].mxu0
        %v730 = vadd.f32 0.0, %v729
        %v731 = vpop.f32.mrb[0].mxu0
        %732 = vmatprep.mubr.f32.mxu0 0.0
        %733 = vmatmul.mubr.f32.gmra.mrb[0].mxu0 %v563
        %v734 = vpop.f32.mrb[0].mxu0
        %v735 = vadd.f32 0.0, %v734
        %v736 = vpop.f32.mrb[0].mxu0
        %737 = vmatprep.mubr.f32.mxu0 0.0
        %738 = vmatmul.mubr.f32.gmra.mrb[0].mxu0 %v564
        %v739 = vpop.f32.mrb[0].mxu0
        %v740 = vadd.f32 0.0, %v739
        %v741 = vpop.f32.mrb[0].mxu0
        %742 = vmatprep.mubr.f32.mxu0 0.0
        %743 = vmatmul.mubr.f32.gmra.mrb[0].mxu0 %v565
        %v744 = vpop.f32.mrb[0].mxu0
        %v745 = vadd.f32 0.0, %v744
        %v746 = vpop.f32.mrb[0].mxu0
        %747 = vmatprep.mubr.f32.mxu0 0.0
        %748 = vmatmul.mubr.f32.gmra.mrb[0].mxu0 %v566
        %v749 = vpop.f32.mrb[0].mxu0
        %v750 = vadd.f32 0.0, %v749
        %v751 = vpop.f32.mrb[0].mxu0
        %752 = vmatprep.mubr.f32.mxu0 0.0
        %753 = vmatmul.mubr.f32.gmra.mrb[0].mxu0 %v567
        %v754 = vpop.f32.mrb[0].mxu0
        %v755 = vadd.f32 0.0, %v754
        %v756 = vpop.f32.mrb[0].mxu0
        %757 = vmatprep.mubr.f32.mxu0 0.0
        %758 = vmatmul.mubr.f32.gmra.mrb[0].mxu0 %v568
        %v759 = vpop.f32.mrb[0].mxu0
        %v760 = vadd.f32 0.0, %v759
        %v761 = vpop.f32.mrb[0].mxu0
        %762 = vmatprep.mubr.f32.mxu0 0.0
        %763 = vmatmul.mubr.f32.gmra.mrb[0].mxu0 %v569
        %v764 = vpop.f32.mrb[0].mxu0
        %v765 = vadd.f32 0.0, %v764
        %v766 = vpop.f32.mrb[0].mxu0
        %767 = vmatprep.mubr.f32.mxu0 0.0
        %768 = vmatmul.mubr.f32.gmra.mrb[0].mxu0 %v570
        %v769 = vpop.f32.mrb[0].mxu0
        %v770 = vadd.f32 0.0, %v769
        %v771 = vpop.f32.mrb[0].mxu0
        %772 = vdwg.mxu0
        %773 = vmatprep.subr.mxu0 0.0
        %774 = vmatpush1.msra.mxu0 %v411
        %775 = vmatprep.subr.mxu0 0.0
        %776 = vmatpush1.msra.mxu0 %v412
        %777 = vmatprep.subr.mxu0 0.0
        %778 = vmatpush1.msra.mxu0 %v413
        %779 = vmatprep.subr.mxu0 0.0
        %780 = vmatpush1.msra.mxu0 %v414
        %781 = vmatprep.subr.mxu0 0.0
        %782 = vmatpush1.msra.mxu0 %v415
        %783 = vmatprep.subr.mxu0 0.0
        %784 = vmatpush1.msra.mxu0 %v416
        %785 = vmatprep.subr.mxu0 0.0
        %786 = vmatpush1.msra.mxu0 %v417
        %787 = vmatprep.subr.mxu0 0.0
        %788 = vmatpush1.msra.mxu0 %v418
        %789 = vmatprep.subr.mxu0 0.0
        %790 = vmatpush1.msra.mxu0 %v419
        %791 = vmatprep.subr.mxu0 0.0
        %792 = vmatpush1.msra.mxu0 %v420
        %793 = vmatprep.subr.mxu0 0.0
        %794 = vmatpush1.msra.mxu0 %v421
        %795 = vmatprep.subr.mxu0 0.0
        %796 = vmatpush1.msra.mxu0 %v422
        %797 = vmatprep.subr.mxu0 0.0
        %798 = vmatpush1.msra.mxu0 %v423
        %799 = vmatprep.subr.mxu0 0.0
        %800 = vmatpush1.msra.mxu0 %v424
        %801 = vmatprep.subr.mxu0 0.0
        %802 = vmatpush1.msra.mxu0 %v425
        %803 = vmatprep.subr.mxu0 0.0
        %804 = vmatpush1.msra.mxu0 %v426
        %805 = vmatprep.subr.mxu0 0.0
        %806 = vmatpush1.msra.mxu0 0.0
        %807 = vmatprep.subr.mxu0 0.0
        %808 = vmatpush1.msra.mxu0 0.0
        %809 = vmatprep.subr.mxu0 0.0
        %810 = vmatpush1.msra.mxu0 0.0
        %811 = vmatprep.subr.mxu0 0.0
        %812 = vmatpush1.msra.mxu0 0.0
        %813 = vmatprep.subr.mxu0 0.0
        %814 = vmatpush1.msra.mxu0 0.0
        %815 = vmatprep.subr.mxu0 0.0
        %816 = vmatpush1.msra.mxu0 0.0
        %817 = vmatprep.subr.mxu0 0.0
        %818 = vmatpush1.msra.mxu0 0.0
        %819 = vmatprep.subr.mxu0 0.0
        %820 = vmatpush1.msra.mxu0 0.0
        %821 = vmatprep.subr.mxu0 0.0
        %822 = vmatpush1.msra.mxu0 0.0
        %823 = vmatprep.subr.mxu0 0.0
        %824 = vmatpush1.msra.mxu0 0.0
        %825 = vmatprep.subr.mxu0 0.0
        %826 = vmatpush1.msra.mxu0 0.0
        %827 = vmatprep.subr.mxu0 0.0
        %828 = vmatpush1.msra.mxu0 0.0
        %829 = vmatprep.subr.mxu0 0.0
        %830 = vmatpush1.msra.mxu0 0.0
        %831 = vmatprep.subr.mxu0 0.0
        %832 = vmatpush1.msra.mxu0 0.0
        %833 = vmatprep.subr.mxu0 0.0
        %834 = vmatpush1.msra.mxu0 0.0
        %835 = vmatprep.subr.mxu0 0.0
        %836 = vmatpush1.msra.mxu0 0.0
        %837 = vmatprep.mubr.f32.mxu0 0.0
        %838 = vmatmul.mubr.f32.gmra.mrb[0].mxu0 %v387
        %v839 = vpop.f32.mrb[0].mxu0
        %v840 = vadd.f32 %v655, %v839
        %v841 = vpop.f32.mrb[0].mxu0
        %842 = vmatprep.mubr.f32.mxu0 0.0
        %843 = vmatmul.mubr.f32.gmra.mrb[0].mxu0 %v388
        %v844 = vpop.f32.mrb[0].mxu0
        %v845 = vadd.f32 %v660, %v844
        %v846 = vpop.f32.mrb[0].mxu0
        %847 = vmatprep.mubr.f32.mxu0 0.0
        %848 = vmatmul.mubr.f32.gmra.mrb[0].mxu0 %v389
        %v849 = vpop.f32.mrb[0].mxu0
        %v850 = vadd.f32 %v665, %v849
        %v851 = vpop.f32.mrb[0].mxu0
        %852 = vmatprep.mubr.f32.mxu0 0.0
        %853 = vmatmul.mubr.f32.gmra.mrb[0].mxu0 %v390
        %v854 = vpop.f32.mrb[0].mxu0
        %v855 = vadd.f32 %v670, %v854
        %v856 = vpop.f32.mrb[0].mxu0
        %857 = vmatprep.mubr.f32.mxu0 0.0
        %858 = vmatmul.mubr.f32.gmra.mrb[0].mxu0 %v391
        %v859 = vpop.f32.mrb[0].mxu0
        %v860 = vadd.f32 %v675, %v859
        %v861 = vpop.f32.mrb[0].mxu0
        %862 = vmatprep.mubr.f32.mxu0 0.0
        %863 = vmatmul.mubr.f32.gmra.mrb[0].mxu0 %v392
        %v864 = vpop.f32.mrb[0].mxu0
        %v865 = vadd.f32 %v680, %v864
        %v866 = vpop.f32.mrb[0].mxu0
        %867 = vmatprep.mubr.f32.mxu0 0.0
        %868 = vmatmul.mubr.f32.gmra.mrb[0].mxu0 %v393
        %v869 = vpop.f32.mrb[0].mxu0
        %v870 = vadd.f32 %v685, %v869
        %v871 = vpop.f32.mrb[0].mxu0
        %872 = vmatprep.mubr.f32.mxu0 0.0
        %873 = vmatmul.mubr.f32.gmra.mrb[0].mxu0 %v394
        %v874 = vpop.f32.mrb[0].mxu0
        %v875 = vadd.f32 %v690, %v874
        %v876 = vpop.f32.mrb[0].mxu0
        %877 = vmatprep.mubr.f32.mxu0 0.0
        %878 = vmatmul.mubr.f32.gmra.mrb[0].mxu0 %v395
        %v879 = vpop.f32.mrb[0].mxu0
        %v880 = vadd.f32 %v695, %v879
        %v881 = vpop.f32.mrb[0].mxu0
        %882 = vmatprep.mubr.f32.mxu0 0.0
        %883 = vmatmul.mubr.f32.gmra.mrb[0].mxu0 %v396
        %v884 = vpop.f32.mrb[0].mxu0
        %v885 = vadd.f32 %v700, %v884
        %v886 = vpop.f32.mrb[0].mxu0
        %887 = vmatprep.mubr.f32.mxu0 0.0
        %888 = vmatmul.mubr.f32.gmra.mrb[0].mxu0 %v397
        %v889 = vpop.f32.mrb[0].mxu0
        %v890 = vadd.f32 %v705, %v889
        %v891 = vpop.f32.mrb[0].mxu0
        %892 = vmatprep.mubr.f32.mxu0 0.0
        %893 = vmatmul.mubr.f32.gmra.mrb[0].mxu0 %v398
        %v894 = vpop.f32.mrb[0].mxu0
        %v895 = vadd.f32 %v710, %v894
        %v896 = vpop.f32.mrb[0].mxu0
        %897 = vmatprep.mubr.f32.mxu0 0.0
        %898 = vmatmul.mubr.f32.gmra.mrb[0].mxu0 %v399
        %v899 = vpop.f32.mrb[0].mxu0
        %v900 = vadd.f32 %v715, %v899
        %v901 = vpop.f32.mrb[0].mxu0
        %902 = vmatprep.mubr.f32.mxu0 0.0
        %903 = vmatmul.mubr.f32.gmra.mrb[0].mxu0 %v400
        %v904 = vpop.f32.mrb[0].mxu0
        %v905 = vadd.f32 %v720, %v904
        %v906 = vpop.f32.mrb[0].mxu0
        %907 = vmatprep.mubr.f32.mxu0 0.0
        %908 = vmatmul.mubr.f32.gmra.mrb[0].mxu0 %v401
        %v909 = vpop.f32.mrb[0].mxu0
        %v910 = vadd.f32 %v725, %v909
        %v911 = vpop.f32.mrb[0].mxu0
        %912 = vmatprep.mubr.f32.mxu0 0.0
        %913 = vmatmul.mubr.f32.gmra.mrb[0].mxu0 %v402
        %v914 = vpop.f32.mrb[0].mxu0
        %v915 = vadd.f32 %v730, %v914
        %v916 = vpop.f32.mrb[0].mxu0
        %917 = vmatprep.mubr.f32.mxu0 0.0
        %918 = vmatmul.mubr.f32.gmra.mrb[0].mxu0 %v403
        %v919 = vpop.f32.mrb[0].mxu0
        %v920 = vadd.f32 %v735, %v919
        %v921 = vpop.f32.mrb[0].mxu0
        %922 = vmatprep.mubr.f32.mxu0 0.0
        %923 = vmatmul.mubr.f32.gmra.mrb[0].mxu0 %v404
        %v924 = vpop.f32.mrb[0].mxu0
        %v925 = vadd.f32 %v740, %v924
        %v926 = vpop.f32.mrb[0].mxu0
        %927 = vmatprep.mubr.f32.mxu0 0.0
        %928 = vmatmul.mubr.f32.gmra.mrb[0].mxu0 %v405
        %v929 = vpop.f32.mrb[0].mxu0
        %v930 = vadd.f32 %v745, %v929
        %v931 = vpop.f32.mrb[0].mxu0
        %932 = vmatprep.mubr.f32.mxu0 0.0
        %933 = vmatmul.mubr.f32.gmra.mrb[0].mxu0 %v406
        %v934 = vpop.f32.mrb[0].mxu0
        %v935 = vadd.f32 %v750, %v934
        %v936 = vpop.f32.mrb[0].mxu0
        %937 = vmatprep.mubr.f32.mxu0 0.0
        %938 = vmatmul.mubr.f32.gmra.mrb[0].mxu0 %v407
        %v939 = vpop.f32.mrb[0].mxu0
        %v940 = vadd.f32 %v755, %v939
        %v941 = vpop.f32.mrb[0].mxu0
        %942 = vmatprep.mubr.f32.mxu0 0.0
        %943 = vmatmul.mubr.f32.gmra.mrb[0].mxu0 %v408
        %v944 = vpop.f32.mrb[0].mxu0
        %v945 = vadd.f32 %v760, %v944
        %v946 = vpop.f32.mrb[0].mxu0
        %947 = vmatprep.mubr.f32.mxu0 0.0
        %948 = vmatmul.mubr.f32.gmra.mrb[0].mxu0 %v409
        %v949 = vpop.f32.mrb[0].mxu0
        %v950 = vadd.f32 %v765, %v949
        %v951 = vpop.f32.mrb[0].mxu0
        %952 = vmatprep.mubr.f32.mxu0 0.0
        %953 = vmatmul.mubr.f32.gmra.mrb[0].mxu0 %v410
        %v954 = vpop.f32.mrb[0].mxu0
        %v955 = vadd.f32 %v770, %v954
        %v956 = vpop.f32.mrb[0].mxu0
        %957 = vdwg.mxu0
        %958 = vset.pattern.permute.xlu0 2
        %959 = vperm.xlu0 %958, %v243
        %v960 = vpop.permute.xlu0 %959
        %961 = vset.pattern.permute.xlu0 2
        %962 = vperm.xlu0 %961, %v244
        %v963 = vpop.permute.xlu0 %962
        %964 = vset.pattern.permute.xlu0 2
        %965 = vperm.xlu0 %964, %v245
        %v966 = vpop.permute.xlu0 %965
        %967 = vset.pattern.permute.xlu0 2
        %968 = vperm.xlu0 %967, %v246
        %v969 = vpop.permute.xlu0 %968
        %970 = vset.pattern.permute.xlu0 2
        %971 = vperm.xlu0 %970, %v247
        %v972 = vpop.permute.xlu0 %971
        %973 = vset.pattern.permute.xlu0 2
        %974 = vperm.xlu0 %973, %v248
        %v975 = vpop.permute.xlu0 %974
        %976 = vset.pattern.permute.xlu0 2
        %977 = vperm.xlu0 %976, %v249
        %v978 = vpop.permute.xlu0 %977
        %979 = vset.pattern.permute.xlu0 2
        %980 = vperm.xlu0 %979, %v250
        %v981 = vpop.permute.xlu0 %980
        %982 = vset.pattern.permute.xlu0 2
        %983 = vperm.xlu0 %982, %v251
        %v984 = vpop.permute.xlu0 %983
        %985 = vset.pattern.permute.xlu0 2
        %986 = vperm.xlu0 %985, %v252
        %v987 = vpop.permute.xlu0 %986
        %988 = vset.pattern.permute.xlu0 2
        %989 = vperm.xlu0 %988, %v253
        %v990 = vpop.permute.xlu0 %989
        %991 = vset.pattern.permute.xlu0 2
        %992 = vperm.xlu0 %991, %v254
        %v993 = vpop.permute.xlu0 %992
        %994 = vset.pattern.permute.xlu0 2
        %995 = vperm.xlu0 %994, %v255
        %v996 = vpop.permute.xlu0 %995
        %997 = vset.pattern.permute.xlu0 2
        %998 = vperm.xlu0 %997, %v256
        %v999 = vpop.permute.xlu0 %998
        %1000 = vset.pattern.permute.xlu0 2
        %1001 = vperm.xlu0 %1000, %v257
        %v1002 = vpop.permute.xlu0 %1001
        %1003 = vset.pattern.permute.xlu0 2
        %1004 = vperm.xlu0 %1003, %v258
        %v1005 = vpop.permute.xlu0 %1004
        %1006 = vset.pattern.permute.xlu0 2
        %1007 = vperm.xlu0 %1006, %v259
        %v1008 = vpop.permute.xlu0 %1007
        %1009 = vset.pattern.permute.xlu0 2
        %1010 = vperm.xlu0 %1009, %v260
        %v1011 = vpop.permute.xlu0 %1010
        %1012 = vset.pattern.permute.xlu0 2
        %1013 = vperm.xlu0 %1012, %v261
        %v1014 = vpop.permute.xlu0 %1013
        %1015 = vset.pattern.permute.xlu0 2
        %1016 = vperm.xlu0 %1015, %v262
        %v1017 = vpop.permute.xlu0 %1016
        %1018 = vset.pattern.permute.xlu0 2
        %1019 = vperm.xlu0 %1018, %v263
        %v1020 = vpop.permute.xlu0 %1019
        %1021 = vset.pattern.permute.xlu0 2
        %1022 = vperm.xlu0 %1021, %v264
        %v1023 = vpop.permute.xlu0 %1022
        %1024 = vset.pattern.permute.xlu0 2
        %1025 = vperm.xlu0 %1024, %v265
        %v1026 = vpop.permute.xlu0 %1025
        %1027 = vset.pattern.permute.xlu0 2
        %1028 = vperm.xlu0 %1027, %v266
        %v1029 = vpop.permute.xlu0 %1028
        %vm1030 = vcmp.eq.s32.totalorder %v242, %v960
        %vm1031 = vcmp.eq.s32.totalorder %v242, %v963
        %vm1032 = vcmp.eq.s32.totalorder %v242, %v966
        %vm1033 = vcmp.eq.s32.totalorder %v242, %v969
        %vm1034 = vcmp.eq.s32.totalorder %v242, %v972
        %vm1035 = vcmp.eq.s32.totalorder %v242, %v975
        %vm1036 = vcmp.eq.s32.totalorder %v242, %v978
        %vm1037 = vcmp.eq.s32.totalorder %v242, %v981
        %vm1038 = vcmp.eq.s32.totalorder %v242, %v984
        %vm1039 = vcmp.eq.s32.totalorder %v242, %v987
        %vm1040 = vcmp.eq.s32.totalorder %v242, %v990
        %vm1041 = vcmp.eq.s32.totalorder %v242, %v993
        %vm1042 = vcmp.eq.s32.totalorder %v242, %v996
        %vm1043 = vcmp.eq.s32.totalorder %v242, %v999
        %vm1044 = vcmp.eq.s32.totalorder %v242, %v1002
        %vm1045 = vcmp.eq.s32.totalorder %v242, %v1005
        %vm1046 = vcmp.eq.s32.totalorder %v242, %v1008
        %vm1047 = vcmp.eq.s32.totalorder %v242, %v1011
        %vm1048 = vcmp.eq.s32.totalorder %v242, %v1014
        %vm1049 = vcmp.eq.s32.totalorder %v242, %v1017
        %vm1050 = vcmp.eq.s32.totalorder %v242, %v1020
        %vm1051 = vcmp.eq.s32.totalorder %v242, %v1023
        %vm1052 = vcmp.eq.s32.totalorder %v242, %v1026
        %vm1053 = vcmp.eq.s32.totalorder %v242, %v1029
        %v1054 = vsel %vm1030, 1, 0
        %v1055 = vsel %vm1031, 1, 0
        %v1056 = vsel %vm1032, 1, 0
        %v1057 = vsel %vm1033, 1, 0
        %v1058 = vsel %vm1034, 1, 0
        %v1059 = vsel %vm1035, 1, 0
        %v1060 = vsel %vm1036, 1, 0
        %v1061 = vsel %vm1037, 1, 0
        %v1062 = vsel %vm1038, 1, 0
        %v1063 = vsel %vm1039, 1, 0
        %v1064 = vsel %vm1040, 1, 0
        %v1065 = vsel %vm1041, 1, 0
        %v1066 = vsel %vm1042, 1, 0
        %v1067 = vsel %vm1043, 1, 0
        %v1068 = vsel %vm1044, 1, 0
        %v1069 = vsel %vm1045, 1, 0
        %v1070 = vsel %vm1046, 1, 0
        %v1071 = vsel %vm1047, 1, 0
        %v1072 = vsel %vm1048, 1, 0
        %v1073 = vsel %vm1049, 1, 0
        %v1074 = vsel %vm1050, 1, 0
        %v1075 = vsel %vm1051, 1, 0
        %v1076 = vsel %vm1052, 1, 0
        %v1077 = vsel %vm1053, 1, 0
        %v1078 = vcvt.s32.f32 %v1054
        %v1079 = vcvt.s32.f32 %v1055
        %v1080 = vcvt.s32.f32 %v1056
        %v1081 = vcvt.s32.f32 %v1057
        %v1082 = vcvt.s32.f32 %v1058
        %v1083 = vcvt.s32.f32 %v1059
        %v1084 = vcvt.s32.f32 %v1060
        %v1085 = vcvt.s32.f32 %v1061
        %v1086 = vcvt.s32.f32 %v1062
        %v1087 = vcvt.s32.f32 %v1063
        %v1088 = vcvt.s32.f32 %v1064
        %v1089 = vcvt.s32.f32 %v1065
        %v1090 = vcvt.s32.f32 %v1066
        %v1091 = vcvt.s32.f32 %v1067
        %v1092 = vcvt.s32.f32 %v1068
        %v1093 = vcvt.s32.f32 %v1069
        %v1094 = vcvt.s32.f32 %v1070
        %v1095 = vcvt.s32.f32 %v1071
        %v1096 = vcvt.s32.f32 %v1072
        %v1097 = vcvt.s32.f32 %v1073
        %v1098 = vcvt.s32.f32 %v1074
        %v1099 = vcvt.s32.f32 %v1075
        %v1100 = vcvt.s32.f32 %v1076
        %v1101 = vcvt.s32.f32 %v1077
        %s1102 = scalar_lea.vmem [#allocation2], 256
        %v1103 = vld [vmem:[%s1102] sm:$0xff]
        %v1104 = vld [vmem:[%s1102 + $0x8] sm:$0xff]
        %v1105 = vld [vmem:[%s1102 + $0x10] sm:$0xff]
        %v1106 = vld [vmem:[%s1102 + $0x18] sm:$0xff]
        %v1107 = vld [vmem:[%s1102 + $0x20] sm:$0xff]
        %v1108 = vld [vmem:[%s1102 + $0x28] sm:$0xff]
        %v1109 = vld [vmem:[%s1102 + $0x30] sm:$0xff]
        %v1110 = vld [vmem:[%s1102 + $0x38] sm:$0xff]
        %v1111 = vld [vmem:[%s1102 + $0x40] sm:$0xff]
        %v1112 = vld [vmem:[%s1102 + $0x48] sm:$0xff]
        %v1113 = vld [vmem:[%s1102 + $0x50] sm:$0xff]
        %v1114 = vld [vmem:[%s1102 + $0x58] sm:$0xff]
        %v1115 = vld [vmem:[%s1102 + $0x60] sm:$0xff]
        %v1116 = vld [vmem:[%s1102 + $0x68] sm:$0xff]
        %v1117 = vld [vmem:[%s1102 + $0x70] sm:$0xff]
        %v1118 = vld [vmem:[%s1102 + $0x78] sm:$0xff]
        %1119 = vmatprep.subr.mxu0 0.0
        %1120 = vmatpush1.msra.mxu0 %v1103
        %1121 = vmatprep.subr.mxu0 0.0
        %1122 = vmatpush1.msra.mxu0 %v1104
        %1123 = vmatprep.subr.mxu0 0.0
        %1124 = vmatpush1.msra.mxu0 %v1105
        %1125 = vmatprep.subr.mxu0 0.0
        %1126 = vmatpush1.msra.mxu0 %v1106
        %1127 = vmatprep.subr.mxu0 0.0
        %1128 = vmatpush1.msra.mxu0 %v1107
        %1129 = vmatprep.subr.mxu0 0.0
        %1130 = vmatpush1.msra.mxu0 %v1108
        %1131 = vmatprep.subr.mxu0 0.0
        %1132 = vmatpush1.msra.mxu0 %v1109
        %1133 = vmatprep.subr.mxu0 0.0
        %1134 = vmatpush1.msra.mxu0 %v1110
        %1135 = vmatprep.subr.mxu0 0.0
        %1136 = vmatpush1.msra.mxu0 %v1111
        %1137 = vmatprep.subr.mxu0 0.0
        %1138 = vmatpush1.msra.mxu0 %v1112
        %1139 = vmatprep.subr.mxu0 0.0
        %1140 = vmatpush1.msra.mxu0 %v1113
        %1141 = vmatprep.subr.mxu0 0.0
        %1142 = vmatpush1.msra.mxu0 %v1114
        %1143 = vmatprep.subr.mxu0 0.0
        %1144 = vmatpush1.msra.mxu0 %v1115
        %1145 = vmatprep.subr.mxu0 0.0
        %1146 = vmatpush1.msra.mxu0 %v1116
        %1147 = vmatprep.subr.mxu0 0.0
        %1148 = vmatpush1.msra.mxu0 %v1117
        %1149 = vmatprep.subr.mxu0 0.0
        %1150 = vmatpush1.msra.mxu0 %v1118
        %1151 = vmatprep.subr.mxu0 0.0
        %1152 = vmatpush1.msra.mxu0 0.0
        %1153 = vmatprep.subr.mxu0 0.0
        %1154 = vmatpush1.msra.mxu0 0.0
        %1155 = vmatprep.subr.mxu0 0.0
        %1156 = vmatpush1.msra.mxu0 0.0
        %1157 = vmatprep.subr.mxu0 0.0
        %1158 = vmatpush1.msra.mxu0 0.0
        %1159 = vmatprep.subr.mxu0 0.0
        %1160 = vmatpush1.msra.mxu0 0.0
        %1161 = vmatprep.subr.mxu0 0.0
        %1162 = vmatpush1.msra.mxu0 0.0
        %1163 = vmatprep.subr.mxu0 0.0
        %1164 = vmatpush1.msra.mxu0 0.0
        %1165 = vmatprep.subr.mxu0 0.0
        %1166 = vmatpush1.msra.mxu0 0.0
        %1167 = vmatprep.subr.mxu0 0.0
        %1168 = vmatpush1.msra.mxu0 0.0
        %1169 = vmatprep.subr.mxu0 0.0
        %1170 = vmatpush1.msra.mxu0 0.0
        %1171 = vmatprep.subr.mxu0 0.0
        %1172 = vmatpush1.msra.mxu0 0.0
        %1173 = vmatprep.subr.mxu0 0.0
        %1174 = vmatpush1.msra.mxu0 0.0
        %1175 = vmatprep.subr.mxu0 0.0
        %1176 = vmatpush1.msra.mxu0 0.0
        %1177 = vmatprep.subr.mxu0 0.0
        %1178 = vmatpush1.msra.mxu0 0.0
        %1179 = vmatprep.subr.mxu0 0.0
        %1180 = vmatpush1.msra.mxu0 0.0
        %1181 = vmatprep.subr.mxu0 0.0
        %1182 = vmatpush1.msra.mxu0 0.0
        %1183 = vmatprep.mubr.f32.mxu0 0.0
        %1184 = vmatmul.mubr.f32.gmra.mrb[0].mxu0 %v1078
        %v1185 = vpop.f32.mrb[0].mxu0
        %v1186 = vadd.f32 0.0, %v1185
        %v1187 = vpop.f32.mrb[0].mxu0
        %1188 = vmatprep.mubr.f32.mxu0 0.0
        %1189 = vmatmul.mubr.f32.gmra.mrb[0].mxu0 %v1079
        %v1190 = vpop.f32.mrb[0].mxu0
        %v1191 = vadd.f32 0.0, %v1190
        %v1192 = vpop.f32.mrb[0].mxu0
        %1193 = vmatprep.mubr.f32.mxu0 0.0
        %1194 = vmatmul.mubr.f32.gmra.mrb[0].mxu0 %v1080
        %v1195 = vpop.f32.mrb[0].mxu0
        %v1196 = vadd.f32 0.0, %v1195
        %v1197 = vpop.f32.mrb[0].mxu0
        %1198 = vmatprep.mubr.f32.mxu0 0.0
        %1199 = vmatmul.mubr.f32.gmra.mrb[0].mxu0 %v1081
        %v1200 = vpop.f32.mrb[0].mxu0
        %v1201 = vadd.f32 0.0, %v1200
        %v1202 = vpop.f32.mrb[0].mxu0
        %1203 = vmatprep.mubr.f32.mxu0 0.0
        %1204 = vmatmul.mubr.f32.gmra.mrb[0].mxu0 %v1082
        %v1205 = vpop.f32.mrb[0].mxu0
        %v1206 = vadd.f32 0.0, %v1205
        %v1207 = vpop.f32.mrb[0].mxu0
        %1208 = vmatprep.mubr.f32.mxu0 0.0
        %1209 = vmatmul.mubr.f32.gmra.mrb[0].mxu0 %v1083
        %v1210 = vpop.f32.mrb[0].mxu0
        %v1211 = vadd.f32 0.0, %v1210
        %v1212 = vpop.f32.mrb[0].mxu0
        %1213 = vmatprep.mubr.f32.mxu0 0.0
        %1214 = vmatmul.mubr.f32.gmra.mrb[0].mxu0 %v1084
        %v1215 = vpop.f32.mrb[0].mxu0
        %v1216 = vadd.f32 0.0, %v1215
        %v1217 = vpop.f32.mrb[0].mxu0
        %1218 = vmatprep.mubr.f32.mxu0 0.0
        %1219 = vmatmul.mubr.f32.gmra.mrb[0].mxu0 %v1085
        %v1220 = vpop.f32.mrb[0].mxu0
        %v1221 = vadd.f32 0.0, %v1220
        %v1222 = vpop.f32.mrb[0].mxu0
        %1223 = vmatprep.mubr.f32.mxu0 0.0
        %1224 = vmatmul.mubr.f32.gmra.mrb[0].mxu0 %v1086
        %v1225 = vpop.f32.mrb[0].mxu0
        %v1226 = vadd.f32 0.0, %v1225
        %v1227 = vpop.f32.mrb[0].mxu0
        %1228 = vmatprep.mubr.f32.mxu0 0.0
        %1229 = vmatmul.mubr.f32.gmra.mrb[0].mxu0 %v1087
        %v1230 = vpop.f32.mrb[0].mxu0
        %v1231 = vadd.f32 0.0, %v1230
        %v1232 = vpop.f32.mrb[0].mxu0
        %1233 = vmatprep.mubr.f32.mxu0 0.0
        %1234 = vmatmul.mubr.f32.gmra.mrb[0].mxu0 %v1088
        %v1235 = vpop.f32.mrb[0].mxu0
        %v1236 = vadd.f32 0.0, %v1235
        %v1237 = vpop.f32.mrb[0].mxu0
        %1238 = vmatprep.mubr.f32.mxu0 0.0
        %1239 = vmatmul.mubr.f32.gmra.mrb[0].mxu0 %v1089
        %v1240 = vpop.f32.mrb[0].mxu0
        %v1241 = vadd.f32 0.0, %v1240
        %v1242 = vpop.f32.mrb[0].mxu0
        %1243 = vmatprep.mubr.f32.mxu0 0.0
        %1244 = vmatmul.mubr.f32.gmra.mrb[0].mxu0 %v1090
        %v1245 = vpop.f32.mrb[0].mxu0
        %v1246 = vadd.f32 0.0, %v1245
        %v1247 = vpop.f32.mrb[0].mxu0
        %1248 = vmatprep.mubr.f32.mxu0 0.0
        %1249 = vmatmul.mubr.f32.gmra.mrb[0].mxu0 %v1091
        %v1250 = vpop.f32.mrb[0].mxu0
        %v1251 = vadd.f32 0.0, %v1250
        %v1252 = vpop.f32.mrb[0].mxu0
        %1253 = vmatprep.mubr.f32.mxu0 0.0
        %1254 = vmatmul.mubr.f32.gmra.mrb[0].mxu0 %v1092
        %v1255 = vpop.f32.mrb[0].mxu0
        %v1256 = vadd.f32 0.0, %v1255
        %v1257 = vpop.f32.mrb[0].mxu0
        %1258 = vmatprep.mubr.f32.mxu0 0.0
        %1259 = vmatmul.mubr.f32.gmra.mrb[0].mxu0 %v1093
        %v1260 = vpop.f32.mrb[0].mxu0
        %v1261 = vadd.f32 0.0, %v1260
        %v1262 = vpop.f32.mrb[0].mxu0
        %1263 = vmatprep.mubr.f32.mxu0 0.0
        %1264 = vmatmul.mubr.f32.gmra.mrb[0].mxu0 %v1094
        %v1265 = vpop.f32.mrb[0].mxu0
        %v1266 = vadd.f32 0.0, %v1265
        %v1267 = vpop.f32.mrb[0].mxu0
        %1268 = vmatprep.mubr.f32.mxu0 0.0
        %1269 = vmatmul.mubr.f32.gmra.mrb[0].mxu0 %v1095
        %v1270 = vpop.f32.mrb[0].mxu0
        %v1271 = vadd.f32 0.0, %v1270
        %v1272 = vpop.f32.mrb[0].mxu0
        %1273 = vmatprep.mubr.f32.mxu0 0.0
        %1274 = vmatmul.mubr.f32.gmra.mrb[0].mxu0 %v1096
        %v1275 = vpop.f32.mrb[0].mxu0
        %v1276 = vadd.f32 0.0, %v1275
        %v1277 = vpop.f32.mrb[0].mxu0
        %1278 = vmatprep.mubr.f32.mxu0 0.0
        %1279 = vmatmul.mubr.f32.gmra.mrb[0].mxu0 %v1097
        %v1280 = vpop.f32.mrb[0].mxu0
        %v1281 = vadd.f32 0.0, %v1280
        %v1282 = vpop.f32.mrb[0].mxu0
        %1283 = vmatprep.mubr.f32.mxu0 0.0
        %1284 = vmatmul.mubr.f32.gmra.mrb[0].mxu0 %v1098
        %v1285 = vpop.f32.mrb[0].mxu0
        %v1286 = vadd.f32 0.0, %v1285
        %v1287 = vpop.f32.mrb[0].mxu0
        %1288 = vmatprep.mubr.f32.mxu0 0.0
        %1289 = vmatmul.mubr.f32.gmra.mrb[0].mxu0 %v1099
        %v1290 = vpop.f32.mrb[0].mxu0
        %v1291 = vadd.f32 0.0, %v1290
        %v1292 = vpop.f32.mrb[0].mxu0
        %1293 = vmatprep.mubr.f32.mxu0 0.0
        %1294 = vmatmul.mubr.f32.gmra.mrb[0].mxu0 %v1100
        %v1295 = vpop.f32.mrb[0].mxu0
        %v1296 = vadd.f32 0.0, %v1295
        %v1297 = vpop.f32.mrb[0].mxu0
        %1298 = vmatprep.mubr.f32.mxu0 0.0
        %1299 = vmatmul.mubr.f32.gmra.mrb[0].mxu0 %v1101
        %v1300 = vpop.f32.mrb[0].mxu0
        %v1301 = vadd.f32 0.0, %v1300
        %v1302 = vpop.f32.mrb[0].mxu0
        %1303 = vdwg.mxu0
        %v1304 = vadd.f32 %v840, %v1186
        %v1305 = vadd.f32 %v845, %v1191
        %v1306 = vadd.f32 %v850, %v1196
        %v1307 = vadd.f32 %v855, %v1201
        %v1308 = vadd.f32 %v860, %v1206
        %v1309 = vadd.f32 %v865, %v1211
        %v1310 = vadd.f32 %v870, %v1216
        %v1311 = vadd.f32 %v875, %v1221
        %v1312 = vadd.f32 %v880, %v1226
        %v1313 = vadd.f32 %v885, %v1231
        %v1314 = vadd.f32 %v890, %v1236
        %v1315 = vadd.f32 %v895, %v1241
        %v1316 = vadd.f32 %v900, %v1246
        %v1317 = vadd.f32 %v905, %v1251
        %v1318 = vadd.f32 %v910, %v1256
        %v1319 = vadd.f32 %v915, %v1261
        %v1320 = vadd.f32 %v920, %v1266
        %v1321 = vadd.f32 %v925, %v1271
        %v1322 = vadd.f32 %v930, %v1276
        %v1323 = vadd.f32 %v935, %v1281
        %v1324 = vadd.f32 %v940, %v1286
        %v1325 = vadd.f32 %v945, %v1291
        %v1326 = vadd.f32 %v950, %v1296
        %v1327 = vadd.f32 %v955, %v1301
        %1328 = vset.pattern.permute.xlu0 3
        %1329 = vperm.xlu0 %1328, %v243
        %v1330 = vpop.permute.xlu0 %1329
        %1331 = vset.pattern.permute.xlu0 3
        %1332 = vperm.xlu0 %1331, %v244
        %v1333 = vpop.permute.xlu0 %1332
        %1334 = vset.pattern.permute.xlu0 3
        %1335 = vperm.xlu0 %1334, %v245
        %v1336 = vpop.permute.xlu0 %1335
        %1337 = vset.pattern.permute.xlu0 3
        %1338 = vperm.xlu0 %1337, %v246
        %v1339 = vpop.permute.xlu0 %1338
        %1340 = vset.pattern.permute.xlu0 3
        %1341 = vperm.xlu0 %1340, %v247
        %v1342 = vpop.permute.xlu0 %1341
        %1343 = vset.pattern.permute.xlu0 3
        %1344 = vperm.xlu0 %1343, %v248
        %v1345 = vpop.permute.xlu0 %1344
        %1346 = vset.pattern.permute.xlu0 3
        %1347 = vperm.xlu0 %1346, %v249
        %v1348 = vpop.permute.xlu0 %1347
        %1349 = vset.pattern.permute.xlu0 3
        %1350 = vperm.xlu0 %1349, %v250
        %v1351 = vpop.permute.xlu0 %1350
        %1352 = vset.pattern.permute.xlu0 3
        %1353 = vperm.xlu0 %1352, %v251
        %v1354 = vpop.permute.xlu0 %1353
        %1355 = vset.pattern.permute.xlu0 3
        %1356 = vperm.xlu0 %1355, %v252
        %v1357 = vpop.permute.xlu0 %1356
        %1358 = vset.pattern.permute.xlu0 3
        %1359 = vperm.xlu0 %1358, %v253
        %v1360 = vpop.permute.xlu0 %1359
        %1361 = vset.pattern.permute.xlu0 3
        %1362 = vperm.xlu0 %1361, %v254
        %v1363 = vpop.permute.xlu0 %1362
        %1364 = vset.pattern.permute.xlu0 3
        %1365 = vperm.xlu0 %1364, %v255
        %v1366 = vpop.permute.xlu0 %1365
        %1367 = vset.pattern.permute.xlu0 3
        %1368 = vperm.xlu0 %1367, %v256
        %v1369 = vpop.permute.xlu0 %1368
        %1370 = vset.pattern.permute.xlu0 3
        %1371 = vperm.xlu0 %1370, %v257
        %v1372 = vpop.permute.xlu0 %1371
        %1373 = vset.pattern.permute.xlu0 3
        %1374 = vperm.xlu0 %1373, %v258
        %v1375 = vpop.permute.xlu0 %1374
        %1376 = vset.pattern.permute.xlu0 3
        %1377 = vperm.xlu0 %1376, %v259
        %v1378 = vpop.permute.xlu0 %1377
        %1379 = vset.pattern.permute.xlu0 3
        %1380 = vperm.xlu0 %1379, %v260
        %v1381 = vpop.permute.xlu0 %1380
        %1382 = vset.pattern.permute.xlu0 3
        %1383 = vperm.xlu0 %1382, %v261
        %v1384 = vpop.permute.xlu0 %1383
        %1385 = vset.pattern.permute.xlu0 3
        %1386 = vperm.xlu0 %1385, %v262
        %v1387 = vpop.permute.xlu0 %1386
        %1388 = vset.pattern.permute.xlu0 3
        %1389 = vperm.xlu0 %1388, %v263
        %v1390 = vpop.permute.xlu0 %1389
        %1391 = vset.pattern.permute.xlu0 3
        %1392 = vperm.xlu0 %1391, %v264
        %v1393 = vpop.permute.xlu0 %1392
        %1394 = vset.pattern.permute.xlu0 3
        %1395 = vperm.xlu0 %1394, %v265
        %v1396 = vpop.permute.xlu0 %1395
        %1397 = vset.pattern.permute.xlu0 3
        %1398 = vperm.xlu0 %1397, %v266
        %v1399 = vpop.permute.xlu0 %1398
        %vm1400 = vcmp.eq.s32.totalorder %v242, %v1330
        %vm1401 = vcmp.eq.s32.totalorder %v242, %v1333
        %vm1402 = vcmp.eq.s32.totalorder %v242, %v1336
        %vm1403 = vcmp.eq.s32.totalorder %v242, %v1339
        %vm1404 = vcmp.eq.s32.totalorder %v242, %v1342
        %vm1405 = vcmp.eq.s32.totalorder %v242, %v1345
        %vm1406 = vcmp.eq.s32.totalorder %v242, %v1348
        %vm1407 = vcmp.eq.s32.totalorder %v242, %v1351
        %vm1408 = vcmp.eq.s32.totalorder %v242, %v1354
        %vm1409 = vcmp.eq.s32.totalorder %v242, %v1357
        %vm1410 = vcmp.eq.s32.totalorder %v242, %v1360
        %vm1411 = vcmp.eq.s32.totalorder %v242, %v1363
        %vm1412 = vcmp.eq.s32.totalorder %v242, %v1366
        %vm1413 = vcmp.eq.s32.totalorder %v242, %v1369
        %vm1414 = vcmp.eq.s32.totalorder %v242, %v1372
        %vm1415 = vcmp.eq.s32.totalorder %v242, %v1375
        %vm1416 = vcmp.eq.s32.totalorder %v242, %v1378
        %vm1417 = vcmp.eq.s32.totalorder %v242, %v1381
        %vm1418 = vcmp.eq.s32.totalorder %v242, %v1384
        %vm1419 = vcmp.eq.s32.totalorder %v242, %v1387
        %vm1420 = vcmp.eq.s32.totalorder %v242, %v1390
        %vm1421 = vcmp.eq.s32.totalorder %v242, %v1393
        %vm1422 = vcmp.eq.s32.totalorder %v242, %v1396
        %vm1423 = vcmp.eq.s32.totalorder %v242, %v1399
        %v1424 = vsel %vm1400, 1, 0
        %v1425 = vsel %vm1401, 1, 0
        %v1426 = vsel %vm1402, 1, 0
        %v1427 = vsel %vm1403, 1, 0
        %v1428 = vsel %vm1404, 1, 0
        %v1429 = vsel %vm1405, 1, 0
        %v1430 = vsel %vm1406, 1, 0
        %v1431 = vsel %vm1407, 1, 0
        %v1432 = vsel %vm1408, 1, 0
        %v1433 = vsel %vm1409, 1, 0
        %v1434 = vsel %vm1410, 1, 0
        %v1435 = vsel %vm1411, 1, 0
        %v1436 = vsel %vm1412, 1, 0
        %v1437 = vsel %vm1413, 1, 0
        %v1438 = vsel %vm1414, 1, 0
        %v1439 = vsel %vm1415, 1, 0
        %v1440 = vsel %vm1416, 1, 0
        %v1441 = vsel %vm1417, 1, 0
        %v1442 = vsel %vm1418, 1, 0
        %v1443 = vsel %vm1419, 1, 0
        %v1444 = vsel %vm1420, 1, 0
        %v1445 = vsel %vm1421, 1, 0
        %v1446 = vsel %vm1422, 1, 0
        %v1447 = vsel %vm1423, 1, 0
        %v1448 = vcvt.s32.f32 %v1424
        %v1449 = vcvt.s32.f32 %v1425
        %v1450 = vcvt.s32.f32 %v1426
        %v1451 = vcvt.s32.f32 %v1427
        %v1452 = vcvt.s32.f32 %v1428
        %v1453 = vcvt.s32.f32 %v1429
        %v1454 = vcvt.s32.f32 %v1430
        %v1455 = vcvt.s32.f32 %v1431
        %v1456 = vcvt.s32.f32 %v1432
        %v1457 = vcvt.s32.f32 %v1433
        %v1458 = vcvt.s32.f32 %v1434
        %v1459 = vcvt.s32.f32 %v1435
        %v1460 = vcvt.s32.f32 %v1436
        %v1461 = vcvt.s32.f32 %v1437
        %v1462 = vcvt.s32.f32 %v1438
        %v1463 = vcvt.s32.f32 %v1439
        %v1464 = vcvt.s32.f32 %v1440
        %v1465 = vcvt.s32.f32 %v1441
        %v1466 = vcvt.s32.f32 %v1442
        %v1467 = vcvt.s32.f32 %v1443
        %v1468 = vcvt.s32.f32 %v1444
        %v1469 = vcvt.s32.f32 %v1445
        %v1470 = vcvt.s32.f32 %v1446
        %v1471 = vcvt.s32.f32 %v1447
        %s1472 = scalar_lea.vmem [#allocation2], 384
        %v1473 = vld [vmem:[%s1472] sm:$0xff]
        %v1474 = vld [vmem:[%s1472 + $0x8] sm:$0xff]
        %v1475 = vld [vmem:[%s1472 + $0x10] sm:$0xff]
        %v1476 = vld [vmem:[%s1472 + $0x18] sm:$0xff]
        %v1477 = vld [vmem:[%s1472 + $0x20] sm:$0xff]
        %v1478 = vld [vmem:[%s1472 + $0x28] sm:$0xff]
        %v1479 = vld [vmem:[%s1472 + $0x30] sm:$0xff]
        %v1480 = vld [vmem:[%s1472 + $0x38] sm:$0xff]
        %v1481 = vld [vmem:[%s1472 + $0x40] sm:$0xff]
        %v1482 = vld [vmem:[%s1472 + $0x48] sm:$0xff]
        %v1483 = vld [vmem:[%s1472 + $0x50] sm:$0xff]
        %v1484 = vld [vmem:[%s1472 + $0x58] sm:$0xff]
        %v1485 = vld [vmem:[%s1472 + $0x60] sm:$0xff]
        %v1486 = vld [vmem:[%s1472 + $0x68] sm:$0xff]
        %v1487 = vld [vmem:[%s1472 + $0x70] sm:$0xff]
        %v1488 = vld [vmem:[%s1472 + $0x78] sm:$0xff]
        %1489 = vmatprep.subr.mxu0 0.0
        %1490 = vmatpush1.msra.mxu0 %v1473
        %1491 = vmatprep.subr.mxu0 0.0
        %1492 = vmatpush1.msra.mxu0 %v1474
        %1493 = vmatprep.subr.mxu0 0.0
        %1494 = vmatpush1.msra.mxu0 %v1475
        %1495 = vmatprep.subr.mxu0 0.0
        %1496 = vmatpush1.msra.mxu0 %v1476
        %1497 = vmatprep.subr.mxu0 0.0
        %1498 = vmatpush1.msra.mxu0 %v1477
        %1499 = vmatprep.subr.mxu0 0.0
        %1500 = vmatpush1.msra.mxu0 %v1478
        %1501 = vmatprep.subr.mxu0 0.0
        %1502 = vmatpush1.msra.mxu0 %v1479
        %1503 = vmatprep.subr.mxu0 0.0
        %1504 = vmatpush1.msra.mxu0 %v1480
        %1505 = vmatprep.subr.mxu0 0.0
        %1506 = vmatpush1.msra.mxu0 %v1481
        %1507 = vmatprep.subr.mxu0 0.0
        %1508 = vmatpush1.msra.mxu0 %v1482
        %1509 = vmatprep.subr.mxu0 0.0
        %1510 = vmatpush1.msra.mxu0 %v1483
        %1511 = vmatprep.subr.mxu0 0.0
        %1512 = vmatpush1.msra.mxu0 %v1484
        %1513 = vmatprep.subr.mxu0 0.0
        %1514 = vmatpush1.msra.mxu0 %v1485
        %1515 = vmatprep.subr.mxu0 0.0
        %1516 = vmatpush1.msra.mxu0 %v1486
        %1517 = vmatprep.subr.mxu0 0.0
        %1518 = vmatpush1.msra.mxu0 %v1487
        %1519 = vmatprep.subr.mxu0 0.0
        %1520 = vmatpush1.msra.mxu0 %v1488
        %1521 = vmatprep.subr.mxu0 0.0
        %1522 = vmatpush1.msra.mxu0 0.0
        %1523 = vmatprep.subr.mxu0 0.0
        %1524 = vmatpush1.msra.mxu0 0.0
        %1525 = vmatprep.subr.mxu0 0.0
        %1526 = vmatpush1.msra.mxu0 0.0
        %1527 = vmatprep.subr.mxu0 0.0
        %1528 = vmatpush1.msra.mxu0 0.0
        %1529 = vmatprep.subr.mxu0 0.0
        %1530 = vmatpush1.msra.mxu0 0.0
        %1531 = vmatprep.subr.mxu0 0.0
        %1532 = vmatpush1.msra.mxu0 0.0
        %1533 = vmatprep.subr.mxu0 0.0
        %1534 = vmatpush1.msra.mxu0 0.0
        %1535 = vmatprep.subr.mxu0 0.0
        %1536 = vmatpush1.msra.mxu0 0.0
        %1537 = vmatprep.subr.mxu0 0.0
        %1538 = vmatpush1.msra.mxu0 0.0
        %1539 = vmatprep.subr.mxu0 0.0
        %1540 = vmatpush1.msra.mxu0 0.0
        %1541 = vmatprep.subr.mxu0 0.0
        %1542 = vmatpush1.msra.mxu0 0.0
        %1543 = vmatprep.subr.mxu0 0.0
        %1544 = vmatpush1.msra.mxu0 0.0
        %1545 = vmatprep.subr.mxu0 0.0
        %1546 = vmatpush1.msra.mxu0 0.0
        %1547 = vmatprep.subr.mxu0 0.0
        %1548 = vmatpush1.msra.mxu0 0.0
        %1549 = vmatprep.subr.mxu0 0.0
        %1550 = vmatpush1.msra.mxu0 0.0
        %1551 = vmatprep.subr.mxu0 0.0
        %1552 = vmatpush1.msra.mxu0 0.0
        %1553 = vmatprep.mubr.f32.mxu0 0.0
        %1554 = vmatmul.mubr.f32.gmra.mrb[0].mxu0 %v1448
        %v1555 = vpop.f32.mrb[0].mxu0
        %v1556 = vadd.f32 0.0, %v1555
        %v1557 = vpop.f32.mrb[0].mxu0
        %1558 = vmatprep.mubr.f32.mxu0 0.0
        %1559 = vmatmul.mubr.f32.gmra.mrb[0].mxu0 %v1449
        %v1560 = vpop.f32.mrb[0].mxu0
        %v1561 = vadd.f32 0.0, %v1560
        %v1562 = vpop.f32.mrb[0].mxu0
        %1563 = vmatprep.mubr.f32.mxu0 0.0
        %1564 = vmatmul.mubr.f32.gmra.mrb[0].mxu0 %v1450
        %v1565 = vpop.f32.mrb[0].mxu0
        %v1566 = vadd.f32 0.0, %v1565
        %v1567 = vpop.f32.mrb[0].mxu0
        %1568 = vmatprep.mubr.f32.mxu0 0.0
        %1569 = vmatmul.mubr.f32.gmra.mrb[0].mxu0 %v1451
        %v1570 = vpop.f32.mrb[0].mxu0
        %v1571 = vadd.f32 0.0, %v1570
        %v1572 = vpop.f32.mrb[0].mxu0
        %1573 = vmatprep.mubr.f32.mxu0 0.0
        %1574 = vmatmul.mubr.f32.gmra.mrb[0].mxu0 %v1452
        %v1575 = vpop.f32.mrb[0].mxu0
        %v1576 = vadd.f32 0.0, %v1575
        %v1577 = vpop.f32.mrb[0].mxu0
        %1578 = vmatprep.mubr.f32.mxu0 0.0
        %1579 = vmatmul.mubr.f32.gmra.mrb[0].mxu0 %v1453
        %v1580 = vpop.f32.mrb[0].mxu0
        %v1581 = vadd.f32 0.0, %v1580
        %v1582 = vpop.f32.mrb[0].mxu0
        %1583 = vmatprep.mubr.f32.mxu0 0.0
        %1584 = vmatmul.mubr.f32.gmra.mrb[0].mxu0 %v1454
        %v1585 = vpop.f32.mrb[0].mxu0
        %v1586 = vadd.f32 0.0, %v1585
        %v1587 = vpop.f32.mrb[0].mxu0
        %1588 = vmatprep.mubr.f32.mxu0 0.0
        %1589 = vmatmul.mubr.f32.gmra.mrb[0].mxu0 %v1455
        %v1590 = vpop.f32.mrb[0].mxu0
        %v1591 = vadd.f32 0.0, %v1590
        %v1592 = vpop.f32.mrb[0].mxu0
        %1593 = vmatprep.mubr.f32.mxu0 0.0
        %1594 = vmatmul.mubr.f32.gmra.mrb[0].mxu0 %v1456
        %v1595 = vpop.f32.mrb[0].mxu0
        %v1596 = vadd.f32 0.0, %v1595
        %v1597 = vpop.f32.mrb[0].mxu0
        %1598 = vmatprep.mubr.f32.mxu0 0.0
        %1599 = vmatmul.mubr.f32.gmra.mrb[0].mxu0 %v1457
        %v1600 = vpop.f32.mrb[0].mxu0
        %v1601 = vadd.f32 0.0, %v1600
        %v1602 = vpop.f32.mrb[0].mxu0
        %1603 = vmatprep.mubr.f32.mxu0 0.0
        %1604 = vmatmul.mubr.f32.gmra.mrb[0].mxu0 %v1458
        %v1605 = vpop.f32.mrb[0].mxu0
        %v1606 = vadd.f32 0.0, %v1605
        %v1607 = vpop.f32.mrb[0].mxu0
        %1608 = vmatprep.mubr.f32.mxu0 0.0
        %1609 = vmatmul.mubr.f32.gmra.mrb[0].mxu0 %v1459
        %v1610 = vpop.f32.mrb[0].mxu0
        %v1611 = vadd.f32 0.0, %v1610
        %v1612 = vpop.f32.mrb[0].mxu0
        %1613 = vmatprep.mubr.f32.mxu0 0.0
        %1614 = vmatmul.mubr.f32.gmra.mrb[0].mxu0 %v1460
        %v1615 = vpop.f32.mrb[0].mxu0
        %v1616 = vadd.f32 0.0, %v1615
        %v1617 = vpop.f32.mrb[0].mxu0
        %1618 = vmatprep.mubr.f32.mxu0 0.0
        %1619 = vmatmul.mubr.f32.gmra.mrb[0].mxu0 %v1461
        %v1620 = vpop.f32.mrb[0].mxu0
        %v1621 = vadd.f32 0.0, %v1620
        %v1622 = vpop.f32.mrb[0].mxu0
        %1623 = vmatprep.mubr.f32.mxu0 0.0
        %1624 = vmatmul.mubr.f32.gmra.mrb[0].mxu0 %v1462
        %v1625 = vpop.f32.mrb[0].mxu0
        %v1626 = vadd.f32 0.0, %v1625
        %v1627 = vpop.f32.mrb[0].mxu0
        %1628 = vmatprep.mubr.f32.mxu0 0.0
        %1629 = vmatmul.mubr.f32.gmra.mrb[0].mxu0 %v1463
        %v1630 = vpop.f32.mrb[0].mxu0
        %v1631 = vadd.f32 0.0, %v1630
        %v1632 = vpop.f32.mrb[0].mxu0
        %1633 = vmatprep.mubr.f32.mxu0 0.0
        %1634 = vmatmul.mubr.f32.gmra.mrb[0].mxu0 %v1464
        %v1635 = vpop.f32.mrb[0].mxu0
        %v1636 = vadd.f32 0.0, %v1635
        %v1637 = vpop.f32.mrb[0].mxu0
        %1638 = vmatprep.mubr.f32.mxu0 0.0
        %1639 = vmatmul.mubr.f32.gmra.mrb[0].mxu0 %v1465
        %v1640 = vpop.f32.mrb[0].mxu0
        %v1641 = vadd.f32 0.0, %v1640
        %v1642 = vpop.f32.mrb[0].mxu0
        %1643 = vmatprep.mubr.f32.mxu0 0.0
        %1644 = vmatmul.mubr.f32.gmra.mrb[0].mxu0 %v1466
        %v1645 = vpop.f32.mrb[0].mxu0
        %v1646 = vadd.f32 0.0, %v1645
        %v1647 = vpop.f32.mrb[0].mxu0
        %1648 = vmatprep.mubr.f32.mxu0 0.0
        %1649 = vmatmul.mubr.f32.gmra.mrb[0].mxu0 %v1467
        %v1650 = vpop.f32.mrb[0].mxu0
        %v1651 = vadd.f32 0.0, %v1650
        %v1652 = vpop.f32.mrb[0].mxu0
        %1653 = vmatprep.mubr.f32.mxu0 0.0
        %1654 = vmatmul.mubr.f32.gmra.mrb[0].mxu0 %v1468
        %v1655 = vpop.f32.mrb[0].mxu0
        %v1656 = vadd.f32 0.0, %v1655
        %v1657 = vpop.f32.mrb[0].mxu0
        %1658 = vmatprep.mubr.f32.mxu0 0.0
        %1659 = vmatmul.mubr.f32.gmra.mrb[0].mxu0 %v1469
        %v1660 = vpop.f32.mrb[0].mxu0
        %v1661 = vadd.f32 0.0, %v1660
        %v1662 = vpop.f32.mrb[0].mxu0
        %1663 = vmatprep.mubr.f32.mxu0 0.0
        %1664 = vmatmul.mubr.f32.gmra.mrb[0].mxu0 %v1470
        %v1665 = vpop.f32.mrb[0].mxu0
        %v1666 = vadd.f32 0.0, %v1665
        %v1667 = vpop.f32.mrb[0].mxu0
        %1668 = vmatprep.mubr.f32.mxu0 0.0
        %1669 = vmatmul.mubr.f32.gmra.mrb[0].mxu0 %v1471
        %v1670 = vpop.f32.mrb[0].mxu0
        %v1671 = vadd.f32 0.0, %v1670
        %v1672 = vpop.f32.mrb[0].mxu0
        %1673 = vdwg.mxu0
        %v1674 = vadd.f32 %v1304, %v1556
        %v1675 = vadd.f32 %v1305, %v1561
        %v1676 = vadd.f32 %v1306, %v1566
        %v1677 = vadd.f32 %v1307, %v1571
        %v1678 = vadd.f32 %v1308, %v1576
        %v1679 = vadd.f32 %v1309, %v1581
        %v1680 = vadd.f32 %v1310, %v1586
        %v1681 = vadd.f32 %v1311, %v1591
        %v1682 = vadd.f32 %v1312, %v1596
        %v1683 = vadd.f32 %v1313, %v1601
        %v1684 = vadd.f32 %v1314, %v1606
        %v1685 = vadd.f32 %v1315, %v1611
        %v1686 = vadd.f32 %v1316, %v1616
        %v1687 = vadd.f32 %v1317, %v1621
        %v1688 = vadd.f32 %v1318, %v1626
        %v1689 = vadd.f32 %v1319, %v1631
        %v1690 = vadd.f32 %v1320, %v1636
        %v1691 = vadd.f32 %v1321, %v1641
        %v1692 = vadd.f32 %v1322, %v1646
        %v1693 = vadd.f32 %v1323, %v1651
        %v1694 = vadd.f32 %v1324, %v1656
        %v1695 = vadd.f32 %v1325, %v1661
        %v1696 = vadd.f32 %v1326, %v1666
        %v1697 = vadd.f32 %v1327, %v1671
        %v1698 = vld [vmem:[%s2] sm:$0x1]
        %v1700 = vlaneseq
        %v1701 = vshrl.u32 %v1700, 7
        %v1702 = vsub.s32 0, %v1701
        %v1703 = vrot.slane %v1698, %v1702
        %v1705 = vadd.f32 %v1674, %v1703
        %v1706 = vadd.f32 %v1675, %v1703
        %v1707 = vadd.f32 %v1676, %v1703
        %v1708 = vadd.f32 %v1677, %v1703
        %v1709 = vadd.f32 %v1678, %v1703
        %v1710 = vadd.f32 %v1679, %v1703
        %v1711 = vadd.f32 %v1680, %v1703
        %v1712 = vadd.f32 %v1681, %v1703
        %v1713 = vadd.f32 %v1682, %v1703
        %v1714 = vadd.f32 %v1683, %v1703
        %v1715 = vadd.f32 %v1684, %v1703
        %v1716 = vadd.f32 %v1685, %v1703
        %v1717 = vadd.f32 %v1686, %v1703
        %v1718 = vadd.f32 %v1687, %v1703
        %v1719 = vadd.f32 %v1688, %v1703
        %v1720 = vadd.f32 %v1689, %v1703
        %v1721 = vadd.f32 %v1690, %v1703
        %v1722 = vadd.f32 %v1691, %v1703
        %v1723 = vadd.f32 %v1692, %v1703
        %v1724 = vadd.f32 %v1693, %v1703
        %v1725 = vadd.f32 %v1694, %v1703
        %v1726 = vadd.f32 %v1695, %v1703
        %v1727 = vadd.f32 %v1696, %v1703
        %v1728 = vadd.f32 %v1697, %v1703
        %v1729 = vmax.f32 %v1705, 0.0
        %v1730 = vmax.f32 %v1706, 0.0
        %v1731 = vmax.f32 %v1707, 0.0
        %v1732 = vmax.f32 %v1708, 0.0
        %v1733 = vmax.f32 %v1709, 0.0
        %v1734 = vmax.f32 %v1710, 0.0
        %v1735 = vmax.f32 %v1711, 0.0
        %v1736 = vmax.f32 %v1712, 0.0
        %v1737 = vmax.f32 %v1713, 0.0
        %v1738 = vmax.f32 %v1714, 0.0
        %v1739 = vmax.f32 %v1715, 0.0
        %v1740 = vmax.f32 %v1716, 0.0
        %v1741 = vmax.f32 %v1717, 0.0
        %v1742 = vmax.f32 %v1718, 0.0
        %v1743 = vmax.f32 %v1719, 0.0
        %v1744 = vmax.f32 %v1720, 0.0
        %v1745 = vmax.f32 %v1721, 0.0
        %v1746 = vmax.f32 %v1722, 0.0
        %v1747 = vmax.f32 %v1723, 0.0
        %v1748 = vmax.f32 %v1724, 0.0
        %v1749 = vmax.f32 %v1725, 0.0
        %v1750 = vmax.f32 %v1726, 0.0
        %v1751 = vmax.f32 %v1727, 0.0
        %v1752 = vmax.f32 %v1728, 0.0
        %v1753 = vld [vmem:[%s3] sm:$0xff]
        %v1754 = vld [vmem:[%s3 + $0x8] sm:$0xff]
        %v1755 = vld [vmem:[%s3 + $0x10] sm:$0xff]
        %v1756 = vld [vmem:[%s3 + $0x18] sm:$0xff]
        %v1757 = vld [vmem:[%s3 + $0x20] sm:$0xff]
        %v1758 = vld [vmem:[%s3 + $0x28] sm:$0xff]
        %v1759 = vld [vmem:[%s3 + $0x30] sm:$0xff]
        %v1760 = vld [vmem:[%s3 + $0x38] sm:$0xff]
        %v1761 = vld [vmem:[%s3 + $0x40] sm:$0xff]
        %v1762 = vld [vmem:[%s3 + $0x48] sm:$0xff]
        %v1763 = vld [vmem:[%s3 + $0x50] sm:$0xff]
        %v1764 = vld [vmem:[%s3 + $0x58] sm:$0xff]
        %v1765 = vld [vmem:[%s3 + $0x60] sm:$0xff]
        %v1766 = vld [vmem:[%s3 + $0x68] sm:$0xff]
        %v1767 = vld [vmem:[%s3 + $0x70] sm:$0xff]
        %v1768 = vld [vmem:[%s3 + $0x78] sm:$0xff]
        %v1769 = vld [vmem:[%s4] sm:$0x1]
        %v1771 = vlaneseq
        %v1772 = vshrl.u32 %v1771, 7
        %v1773 = vsub.s32 0, %v1772
        %v1774 = vrot.slane %v1769, %v1773
        %1776 = vmatprep.subr.mxu0 0.0
        %1777 = vmatpush1.msra.mxu0 %v1753
        %1778 = vmatprep.subr.mxu0 0.0
        %1779 = vmatpush1.msra.mxu0 %v1754
        %1780 = vmatprep.subr.mxu0 0.0
        %1781 = vmatpush1.msra.mxu0 %v1755
        %1782 = vmatprep.subr.mxu0 0.0
        %1783 = vmatpush1.msra.mxu0 %v1756
        %1784 = vmatprep.subr.mxu0 0.0
        %1785 = vmatpush1.msra.mxu0 %v1757
        %1786 = vmatprep.subr.mxu0 0.0
        %1787 = vmatpush1.msra.mxu0 %v1758
        %1788 = vmatprep.subr.mxu0 0.0
        %1789 = vmatpush1.msra.mxu0 %v1759
        %1790 = vmatprep.subr.mxu0 0.0
        %1791 = vmatpush1.msra.mxu0 %v1760
        %1792 = vmatprep.subr.mxu0 0.0
        %1793 = vmatpush1.msra.mxu0 %v1761
        %1794 = vmatprep.subr.mxu0 0.0
        %1795 = vmatpush1.msra.mxu0 %v1762
        %1796 = vmatprep.subr.mxu0 0.0
        %1797 = vmatpush1.msra.mxu0 %v1763
        %1798 = vmatprep.subr.mxu0 0.0
        %1799 = vmatpush1.msra.mxu0 %v1764
        %1800 = vmatprep.subr.mxu0 0.0
        %1801 = vmatpush1.msra.mxu0 %v1765
        %1802 = vmatprep.subr.mxu0 0.0
        %1803 = vmatpush1.msra.mxu0 %v1766
        %1804 = vmatprep.subr.mxu0 0.0
        %1805 = vmatpush1.msra.mxu0 %v1767
        %1806 = vmatprep.subr.mxu0 0.0
        %1807 = vmatpush1.msra.mxu0 %v1768
        %1808 = vmatprep.subr.mxu0 0.0
        %1809 = vmatpush1.msra.mxu0 0.0
        %1810 = vmatprep.subr.mxu0 0.0
        %1811 = vmatpush1.msra.mxu0 0.0
        %1812 = vmatprep.subr.mxu0 0.0
        %1813 = vmatpush1.msra.mxu0 0.0
        %1814 = vmatprep.subr.mxu0 0.0
        %1815 = vmatpush1.msra.mxu0 0.0
        %1816 = vmatprep.subr.mxu0 0.0
        %1817 = vmatpush1.msra.mxu0 0.0
        %1818 = vmatprep.subr.mxu0 0.0
        %1819 = vmatpush1.msra.mxu0 0.0
        %1820 = vmatprep.subr.mxu0 0.0
        %1821 = vmatpush1.msra.mxu0 0.0
        %1822 = vmatprep.subr.mxu0 0.0
        %1823 = vmatpush1.msra.mxu0 0.0
        %1824 = vmatprep.subr.mxu0 0.0
        %1825 = vmatpush1.msra.mxu0 0.0
        %1826 = vmatprep.subr.mxu0 0.0
        %1827 = vmatpush1.msra.mxu0 0.0
        %1828 = vmatprep.subr.mxu0 0.0
        %1829 = vmatpush1.msra.mxu0 0.0
        %1830 = vmatprep.subr.mxu0 0.0
        %1831 = vmatpush1.msra.mxu0 0.0
        %1832 = vmatprep.subr.mxu0 0.0
        %1833 = vmatpush1.msra.mxu0 0.0
        %1834 = vmatprep.subr.mxu0 0.0
        %1835 = vmatpush1.msra.mxu0 0.0
        %1836 = vmatprep.subr.mxu0 0.0
        %1837 = vmatpush1.msra.mxu0 0.0
        %1838 = vmatprep.subr.mxu0 0.0
        %1839 = vmatpush1.msra.mxu0 0.0
        %1840 = vmatprep.mubr.f32.mxu0 0.0
        %1841 = vmatmul.mubr.f32.gmra.mrb[0].mxu0 %v1729
        %v1842 = vpop.f32.mrb[0].mxu0
        %v1843 = vadd.f32 %v1774, %v1842
        %v1844 = vpop.f32.mrb[0].mxu0
        %1845 = vmatprep.mubr.f32.mxu0 0.0
        %1846 = vmatmul.mubr.f32.gmra.mrb[0].mxu0 %v1730
        %v1847 = vpop.f32.mrb[0].mxu0
        %v1848 = vadd.f32 %v1774, %v1847
        %v1849 = vpop.f32.mrb[0].mxu0
        %1850 = vmatprep.mubr.f32.mxu0 0.0
        %1851 = vmatmul.mubr.f32.gmra.mrb[0].mxu0 %v1731
        %v1852 = vpop.f32.mrb[0].mxu0
        %v1853 = vadd.f32 %v1774, %v1852
        %v1854 = vpop.f32.mrb[0].mxu0
        %1855 = vmatprep.mubr.f32.mxu0 0.0
        %1856 = vmatmul.mubr.f32.gmra.mrb[0].mxu0 %v1732
        %v1857 = vpop.f32.mrb[0].mxu0
        %v1858 = vadd.f32 %v1774, %v1857
        %v1859 = vpop.f32.mrb[0].mxu0
        %1860 = vmatprep.mubr.f32.mxu0 0.0
        %1861 = vmatmul.mubr.f32.gmra.mrb[0].mxu0 %v1733
        %v1862 = vpop.f32.mrb[0].mxu0
        %v1863 = vadd.f32 %v1774, %v1862
        %v1864 = vpop.f32.mrb[0].mxu0
        %1865 = vmatprep.mubr.f32.mxu0 0.0
        %1866 = vmatmul.mubr.f32.gmra.mrb[0].mxu0 %v1734
        %v1867 = vpop.f32.mrb[0].mxu0
        %v1868 = vadd.f32 %v1774, %v1867
        %v1869 = vpop.f32.mrb[0].mxu0
        %1870 = vmatprep.mubr.f32.mxu0 0.0
        %1871 = vmatmul.mubr.f32.gmra.mrb[0].mxu0 %v1735
        %v1872 = vpop.f32.mrb[0].mxu0
        %v1873 = vadd.f32 %v1774, %v1872
        %v1874 = vpop.f32.mrb[0].mxu0
        %1875 = vmatprep.mubr.f32.mxu0 0.0
        %1876 = vmatmul.mubr.f32.gmra.mrb[0].mxu0 %v1736
        %v1877 = vpop.f32.mrb[0].mxu0
        %v1878 = vadd.f32 %v1774, %v1877
        %v1879 = vpop.f32.mrb[0].mxu0
        %1880 = vmatprep.mubr.f32.mxu0 0.0
        %1881 = vmatmul.mubr.f32.gmra.mrb[0].mxu0 %v1737
        %v1882 = vpop.f32.mrb[0].mxu0
        %v1883 = vadd.f32 %v1774, %v1882
        %v1884 = vpop.f32.mrb[0].mxu0
        %1885 = vmatprep.mubr.f32.mxu0 0.0
        %1886 = vmatmul.mubr.f32.gmra.mrb[0].mxu0 %v1738
        %v1887 = vpop.f32.mrb[0].mxu0
        %v1888 = vadd.f32 %v1774, %v1887
        %v1889 = vpop.f32.mrb[0].mxu0
        %1890 = vmatprep.mubr.f32.mxu0 0.0
        %1891 = vmatmul.mubr.f32.gmra.mrb[0].mxu0 %v1739
        %v1892 = vpop.f32.mrb[0].mxu0
        %v1893 = vadd.f32 %v1774, %v1892
        %v1894 = vpop.f32.mrb[0].mxu0
        %1895 = vmatprep.mubr.f32.mxu0 0.0
        %1896 = vmatmul.mubr.f32.gmra.mrb[0].mxu0 %v1740
        %v1897 = vpop.f32.mrb[0].mxu0
        %v1898 = vadd.f32 %v1774, %v1897
        %v1899 = vpop.f32.mrb[0].mxu0
        %1900 = vmatprep.mubr.f32.mxu0 0.0
        %1901 = vmatmul.mubr.f32.gmra.mrb[0].mxu0 %v1741
        %v1902 = vpop.f32.mrb[0].mxu0
        %v1903 = vadd.f32 %v1774, %v1902
        %v1904 = vpop.f32.mrb[0].mxu0
        %1905 = vmatprep.mubr.f32.mxu0 0.0
        %1906 = vmatmul.mubr.f32.gmra.mrb[0].mxu0 %v1742
        %v1907 = vpop.f32.mrb[0].mxu0
        %v1908 = vadd.f32 %v1774, %v1907
        %v1909 = vpop.f32.mrb[0].mxu0
        %1910 = vmatprep.mubr.f32.mxu0 0.0
        %1911 = vmatmul.mubr.f32.gmra.mrb[0].mxu0 %v1743
        %v1912 = vpop.f32.mrb[0].mxu0
        %v1913 = vadd.f32 %v1774, %v1912
        %v1914 = vpop.f32.mrb[0].mxu0
        %1915 = vmatprep.mubr.f32.mxu0 0.0
        %1916 = vmatmul.mubr.f32.gmra.mrb[0].mxu0 %v1744
        %v1917 = vpop.f32.mrb[0].mxu0
        %v1918 = vadd.f32 %v1774, %v1917
        %v1919 = vpop.f32.mrb[0].mxu0
        %1920 = vmatprep.mubr.f32.mxu0 0.0
        %1921 = vmatmul.mubr.f32.gmra.mrb[0].mxu0 %v1745
        %v1922 = vpop.f32.mrb[0].mxu0
        %v1923 = vadd.f32 %v1774, %v1922
        %v1924 = vpop.f32.mrb[0].mxu0
        %1925 = vmatprep.mubr.f32.mxu0 0.0
        %1926 = vmatmul.mubr.f32.gmra.mrb[0].mxu0 %v1746
        %v1927 = vpop.f32.mrb[0].mxu0
        %v1928 = vadd.f32 %v1774, %v1927
        %v1929 = vpop.f32.mrb[0].mxu0
        %1930 = vmatprep.mubr.f32.mxu0 0.0
        %1931 = vmatmul.mubr.f32.gmra.mrb[0].mxu0 %v1747
        %v1932 = vpop.f32.mrb[0].mxu0
        %v1933 = vadd.f32 %v1774, %v1932
        %v1934 = vpop.f32.mrb[0].mxu0
        %1935 = vmatprep.mubr.f32.mxu0 0.0
        %1936 = vmatmul.mubr.f32.gmra.mrb[0].mxu0 %v1748
        %v1937 = vpop.f32.mrb[0].mxu0
        %v1938 = vadd.f32 %v1774, %v1937
        %v1939 = vpop.f32.mrb[0].mxu0
        %1940 = vmatprep.mubr.f32.mxu0 0.0
        %1941 = vmatmul.mubr.f32.gmra.mrb[0].mxu0 %v1749
        %v1942 = vpop.f32.mrb[0].mxu0
        %v1943 = vadd.f32 %v1774, %v1942
        %v1944 = vpop.f32.mrb[0].mxu0
        %1945 = vmatprep.mubr.f32.mxu0 0.0
        %1946 = vmatmul.mubr.f32.gmra.mrb[0].mxu0 %v1750
        %v1947 = vpop.f32.mrb[0].mxu0
        %v1948 = vadd.f32 %v1774, %v1947
        %v1949 = vpop.f32.mrb[0].mxu0
        %1950 = vmatprep.mubr.f32.mxu0 0.0
        %1951 = vmatmul.mubr.f32.gmra.mrb[0].mxu0 %v1751
        %v1952 = vpop.f32.mrb[0].mxu0
        %v1953 = vadd.f32 %v1774, %v1952
        %v1954 = vpop.f32.mrb[0].mxu0
        %1955 = vmatprep.mubr.f32.mxu0 0.0
        %1956 = vmatmul.mubr.f32.gmra.mrb[0].mxu0 %v1752
        %v1957 = vpop.f32.mrb[0].mxu0
        %v1958 = vadd.f32 %v1774, %v1957
        %v1959 = vpop.f32.mrb[0].mxu0
        %1960 = vdwg.mxu0
        %1961 = vmax.xlane.f32.xlu0 %v1843
        %v1962 = vpop.xlane.xlu0 %1961
        %1963 = vmax.xlane.f32.xlu0 %v1848
        %v1964 = vpop.xlane.xlu0 %1963
        %1965 = vmax.xlane.f32.xlu0 %v1853
        %v1966 = vpop.xlane.xlu0 %1965
        %1967 = vmax.xlane.f32.xlu0 %v1858
        %v1968 = vpop.xlane.xlu0 %1967
        %1969 = vmax.xlane.f32.xlu0 %v1863
        %v1970 = vpop.xlane.xlu0 %1969
        %1971 = vmax.xlane.f32.xlu0 %v1868
        %v1972 = vpop.xlane.xlu0 %1971
        %1973 = vmax.xlane.f32.xlu0 %v1873
        %v1974 = vpop.xlane.xlu0 %1973
        %1975 = vmax.xlane.f32.xlu0 %v1878
        %v1976 = vpop.xlane.xlu0 %1975
        %1977 = vmax.xlane.f32.xlu0 %v1883
        %v1978 = vpop.xlane.xlu0 %1977
        %1979 = vmax.xlane.f32.xlu0 %v1888
        %v1980 = vpop.xlane.xlu0 %1979
        %1981 = vmax.xlane.f32.xlu0 %v1893
        %v1982 = vpop.xlane.xlu0 %1981
        %1983 = vmax.xlane.f32.xlu0 %v1898
        %v1984 = vpop.xlane.xlu0 %1983
        %1985 = vmax.xlane.f32.xlu0 %v1903
        %v1986 = vpop.xlane.xlu0 %1985
        %1987 = vmax.xlane.f32.xlu0 %v1908
        %v1988 = vpop.xlane.xlu0 %1987
        %1989 = vmax.xlane.f32.xlu0 %v1913
        %v1990 = vpop.xlane.xlu0 %1989
        %1991 = vmax.xlane.f32.xlu0 %v1918
        %v1992 = vpop.xlane.xlu0 %1991
        %1993 = vmax.xlane.f32.xlu0 %v1923
        %v1994 = vpop.xlane.xlu0 %1993
        %1995 = vmax.xlane.f32.xlu0 %v1928
        %v1996 = vpop.xlane.xlu0 %1995
        %1997 = vmax.xlane.f32.xlu0 %v1933
        %v1998 = vpop.xlane.xlu0 %1997
        %1999 = vmax.xlane.f32.xlu0 %v1938
        %v2000 = vpop.xlane.xlu0 %1999
        %2001 = vmax.xlane.f32.xlu0 %v1943
        %v2002 = vpop.xlane.xlu0 %2001
        %2003 = vmax.xlane.f32.xlu0 %v1948
        %v2004 = vpop.xlane.xlu0 %2003
        %2005 = vmax.xlane.f32.xlu0 %v1953
        %v2006 = vpop.xlane.xlu0 %2005
        %2007 = vmax.xlane.f32.xlu0 %v1958
        %v2008 = vpop.xlane.xlu0 %2007
        %v2009 = vsub.f32 %v1843, %v1962
        %v2010 = vsub.f32 %v1848, %v1964
        %v2011 = vsub.f32 %v1853, %v1966
        %v2012 = vsub.f32 %v1858, %v1968
        %v2013 = vsub.f32 %v1863, %v1970
        %v2014 = vsub.f32 %v1868, %v1972
        %v2015 = vsub.f32 %v1873, %v1974
        %v2016 = vsub.f32 %v1878, %v1976
        %v2017 = vsub.f32 %v1883, %v1978
        %v2018 = vsub.f32 %v1888, %v1980
        %v2019 = vsub.f32 %v1893, %v1982
        %v2020 = vsub.f32 %v1898, %v1984
        %v2021 = vsub.f32 %v1903, %v1986
        %v2022 = vsub.f32 %v1908, %v1988
        %v2023 = vsub.f32 %v1913, %v1990
        %v2024 = vsub.f32 %v1918, %v1992
        %v2025 = vsub.f32 %v1923, %v1994
        %v2026 = vsub.f32 %v1928, %v1996
        %v2027 = vsub.f32 %v1933, %v1998
        %v2028 = vsub.f32 %v1938, %v2000
        %v2029 = vsub.f32 %v1943, %v2002
        %v2030 = vsub.f32 %v1948, %v2004
        %v2031 = vsub.f32 %v1953, %v2006
        %v2032 = vsub.f32 %v1958, %v2008
        %v2033 = vmul.f32 %v2009, 1.442695
        %v2034 = vpow.pop %v2033
        %v2035 = vmul.f32 %v2010, 1.442695
        %v2036 = vpow.pop %v2035
        %v2037 = vmul.f32 %v2011, 1.442695
        %v2038 = vpow.pop %v2037
        %v2039 = vmul.f32 %v2012, 1.442695
        %v2040 = vpow.pop %v2039
        %v2041 = vmul.f32 %v2013, 1.442695
        %v2042 = vpow.pop %v2041
        %v2043 = vmul.f32 %v2014, 1.442695
        %v2044 = vpow.pop %v2043
        %v2045 = vmul.f32 %v2015, 1.442695
        %v2046 = vpow.pop %v2045
        %v2047 = vmul.f32 %v2016, 1.442695
        %v2048 = vpow.pop %v2047
        %v2049 = vmul.f32 %v2017, 1.442695
        %v2050 = vpow.pop %v2049
        %v2051 = vmul.f32 %v2018, 1.442695
        %v2052 = vpow.pop %v2051
        %v2053 = vmul.f32 %v2019, 1.442695
        %v2054 = vpow.pop %v2053
        %v2055 = vmul.f32 %v2020, 1.442695
        %v2056 = vpow.pop %v2055
        %v2057 = vmul.f32 %v2021, 1.442695
        %v2058 = vpow.pop %v2057
        %v2059 = vmul.f32 %v2022, 1.442695
        %v2060 = vpow.pop %v2059
        %v2061 = vmul.f32 %v2023, 1.442695
        %v2062 = vpow.pop %v2061
        %v2063 = vmul.f32 %v2024, 1.442695
        %v2064 = vpow.pop %v2063
        %v2065 = vmul.f32 %v2025, 1.442695
        %v2066 = vpow.pop %v2065
        %v2067 = vmul.f32 %v2026, 1.442695
        %v2068 = vpow.pop %v2067
        %v2069 = vmul.f32 %v2027, 1.442695
        %v2070 = vpow.pop %v2069
        %v2071 = vmul.f32 %v2028, 1.442695
        %v2072 = vpow.pop %v2071
        %v2073 = vmul.f32 %v2029, 1.442695
        %v2074 = vpow.pop %v2073
        %v2075 = vmul.f32 %v2030, 1.442695
        %v2076 = vpow.pop %v2075
        %v2077 = vmul.f32 %v2031, 1.442695
        %v2078 = vpow.pop %v2077
        %v2079 = vmul.f32 %v2032, 1.442695
        %v2080 = vpow.pop %v2079
        %2081 = vadd.xlane.f32.xlu0 %v2034
        %v2082 = vpop.xlane.xlu0 %2081
        %2083 = vadd.xlane.f32.xlu0 %v2036
        %v2084 = vpop.xlane.xlu0 %2083
        %2085 = vadd.xlane.f32.xlu0 %v2038
        %v2086 = vpop.xlane.xlu0 %2085
        %2087 = vadd.xlane.f32.xlu0 %v2040
        %v2088 = vpop.xlane.xlu0 %2087
        %2089 = vadd.xlane.f32.xlu0 %v2042
        %v2090 = vpop.xlane.xlu0 %2089
        %2091 = vadd.xlane.f32.xlu0 %v2044
        %v2092 = vpop.xlane.xlu0 %2091
        %2093 = vadd.xlane.f32.xlu0 %v2046
        %v2094 = vpop.xlane.xlu0 %2093
        %2095 = vadd.xlane.f32.xlu0 %v2048
        %v2096 = vpop.xlane.xlu0 %2095
        %2097 = vadd.xlane.f32.xlu0 %v2050
        %v2098 = vpop.xlane.xlu0 %2097
        %2099 = vadd.xlane.f32.xlu0 %v2052
        %v2100 = vpop.xlane.xlu0 %2099
        %2101 = vadd.xlane.f32.xlu0 %v2054
        %v2102 = vpop.xlane.xlu0 %2101
        %2103 = vadd.xlane.f32.xlu0 %v2056
        %v2104 = vpop.xlane.xlu0 %2103
        %2105 = vadd.xlane.f32.xlu0 %v2058
        %v2106 = vpop.xlane.xlu0 %2105
        %2107 = vadd.xlane.f32.xlu0 %v2060
        %v2108 = vpop.xlane.xlu0 %2107
        %2109 = vadd.xlane.f32.xlu0 %v2062
        %v2110 = vpop.xlane.xlu0 %2109
        %2111 = vadd.xlane.f32.xlu0 %v2064
        %v2112 = vpop.xlane.xlu0 %2111
        %2113 = vadd.xlane.f32.xlu0 %v2066
        %v2114 = vpop.xlane.xlu0 %2113
        %2115 = vadd.xlane.f32.xlu0 %v2068
        %v2116 = vpop.xlane.xlu0 %2115
        %2117 = vadd.xlane.f32.xlu0 %v2070
        %v2118 = vpop.xlane.xlu0 %2117
        %2119 = vadd.xlane.f32.xlu0 %v2072
        %v2120 = vpop.xlane.xlu0 %2119
        %2121 = vadd.xlane.f32.xlu0 %v2074
        %v2122 = vpop.xlane.xlu0 %2121
        %2123 = vadd.xlane.f32.xlu0 %v2076
        %v2124 = vpop.xlane.xlu0 %2123
        %2125 = vadd.xlane.f32.xlu0 %v2078
        %v2126 = vpop.xlane.xlu0 %2125
        %2127 = vadd.xlane.f32.xlu0 %v2080
        %v2128 = vpop.xlane.xlu0 %2127
        %v2129 = vlog2.pop %v2082
        %v2130 = vmul.f32 %v2129, 0.6931472
        %v2131 = vlog2.pop %v2084
        %v2132 = vmul.f32 %v2131, 0.6931472
        %v2133 = vlog2.pop %v2086
        %v2134 = vmul.f32 %v2133, 0.6931472
        %v2135 = vlog2.pop %v2088
        %v2136 = vmul.f32 %v2135, 0.6931472
        %v2137 = vlog2.pop %v2090
        %v2138 = vmul.f32 %v2137, 0.6931472
        %v2139 = vlog2.pop %v2092
        %v2140 = vmul.f32 %v2139, 0.6931472
        %v2141 = vlog2.pop %v2094
        %v2142 = vmul.f32 %v2141, 0.6931472
        %v2143 = vlog2.pop %v2096
        %v2144 = vmul.f32 %v2143, 0.6931472
        %v2145 = vlog2.pop %v2098
        %v2146 = vmul.f32 %v2145, 0.6931472
        %v2147 = vlog2.pop %v2100
        %v2148 = vmul.f32 %v2147, 0.6931472
        %v2149 = vlog2.pop %v2102
        %v2150 = vmul.f32 %v2149, 0.6931472
        %v2151 = vlog2.pop %v2104
        %v2152 = vmul.f32 %v2151, 0.6931472
        %v2153 = vlog2.pop %v2106
        %v2154 = vmul.f32 %v2153, 0.6931472
        %v2155 = vlog2.pop %v2108
        %v2156 = vmul.f32 %v2155, 0.6931472
        %v2157 = vlog2.pop %v2110
        %v2158 = vmul.f32 %v2157, 0.6931472
        %v2159 = vlog2.pop %v2112
        %v2160 = vmul.f32 %v2159, 0.6931472
        %v2161 = vlog2.pop %v2114
        %v2162 = vmul.f32 %v2161, 0.6931472
        %v2163 = vlog2.pop %v2116
        %v2164 = vmul.f32 %v2163, 0.6931472
        %v2165 = vlog2.pop %v2118
        %v2166 = vmul.f32 %v2165, 0.6931472
        %v2167 = vlog2.pop %v2120
        %v2168 = vmul.f32 %v2167, 0.6931472
        %v2169 = vlog2.pop %v2122
        %v2170 = vmul.f32 %v2169, 0.6931472
        %v2171 = vlog2.pop %v2124
        %v2172 = vmul.f32 %v2171, 0.6931472
        %v2173 = vlog2.pop %v2126
        %v2174 = vmul.f32 %v2173, 0.6931472
        %v2175 = vlog2.pop %v2128
        %v2176 = vmul.f32 %v2175, 0.6931472
        %v2177 = vsub.f32 %v2009, %v2130
        %v2178 = vsub.f32 %v2010, %v2132
        %v2179 = vsub.f32 %v2011, %v2134
        %v2180 = vsub.f32 %v2012, %v2136
        %v2181 = vsub.f32 %v2013, %v2138
        %v2182 = vsub.f32 %v2014, %v2140
        %v2183 = vsub.f32 %v2015, %v2142
        %v2184 = vsub.f32 %v2016, %v2144
        %v2185 = vsub.f32 %v2017, %v2146
        %v2186 = vsub.f32 %v2018, %v2148
        %v2187 = vsub.f32 %v2019, %v2150
        %v2188 = vsub.f32 %v2020, %v2152
        %v2189 = vsub.f32 %v2021, %v2154
        %v2190 = vsub.f32 %v2022, %v2156
        %v2191 = vsub.f32 %v2023, %v2158
        %v2192 = vsub.f32 %v2024, %v2160
        %v2193 = vsub.f32 %v2025, %v2162
        %v2194 = vsub.f32 %v2026, %v2164
        %v2195 = vsub.f32 %v2027, %v2166
        %v2196 = vsub.f32 %v2028, %v2168
        %v2197 = vsub.f32 %v2029, %v2170
        %v2198 = vsub.f32 %v2030, %v2172
        %v2199 = vsub.f32 %v2031, %v2174
        %v2200 = vsub.f32 %v2032, %v2176
        %2201 = vst [vmem:[%s233] sm:$0xff] %v2177
        %2202 = vst [vmem:[%s233 + $0x8] sm:$0xff] %v2178
        %2203 = vst [vmem:[%s233 + $0x10] sm:$0xff] %v2179
        %2204 = vst [vmem:[%s233 + $0x18] sm:$0xff] %v2180
        %2205 = vst [vmem:[%s233 + $0x20] sm:$0xff] %v2181
        %2206 = vst [vmem:[%s233 + $0x28] sm:$0xff] %v2182
        %2207 = vst [vmem:[%s233 + $0x30] sm:$0xff] %v2183
        %2208 = vst [vmem:[%s233 + $0x38] sm:$0xff] %v2184
        %2209 = vst [vmem:[%s233 + $0x40] sm:$0xff] %v2185
        %2210 = vst [vmem:[%s233 + $0x48] sm:$0xff] %v2186
        %2211 = vst [vmem:[%s233 + $0x50] sm:$0xff] %v2187
        %2212 = vst [vmem:[%s233 + $0x58] sm:$0xff] %v2188
        %2213 = vst [vmem:[%s233 + $0x60] sm:$0xff] %v2189
        %2214 = vst [vmem:[%s233 + $0x68] sm:$0xff] %v2190
        %2215 = vst [vmem:[%s233 + $0x70] sm:$0xff] %v2191
        %2216 = vst [vmem:[%s233 + $0x78] sm:$0xff] %v2192
        %2217 = vst [vmem:[%s233 + $0x80] sm:$0xff] %v2193
        %2218 = vst [vmem:[%s233 + $0x88] sm:$0xff] %v2194
        %2219 = vst [vmem:[%s233 + $0x90] sm:$0xff] %v2195
        %2220 = vst [vmem:[%s233 + $0x98] sm:$0xff] %v2196
        %2221 = vst [vmem:[%s233 + $0xa0] sm:$0xff] %v2197
        %2222 = vst [vmem:[%s233 + $0xa8] sm:$0xff] %v2198
        %2223 = vst [vmem:[%s233 + $0xb0] sm:$0xff] %v2199
        %2224 = vst [vmem:[%s233 + $0xb8] sm:$0xff] %v2200
        %s2225 = sand.u32 %s138, 1
        %s2226 = scalar_lea.sflag [#allocation4], %s2225
        %s2227 = sand.u32 %s138, 1
        %s2228 = smul.addr %s2227, 192
        %s2229 = scalar_lea.vmem [#allocation5], %s2228
        // Predicated region
        $region45: #{tpu_custom_call.1} parent=39 // pred_check
          %p2230 = pneg %p148
        $region46: #{tpu_custom_call.1} parent=39 // pred_check_branch
          %2232 = sbr.rel (%p2230) target = $region48
        $region47: #{tpu_custom_call.1} parent=39 // pred_region
          %s2233 = smul.u32 24, %s20
          %s2235 = ssub.s32 3072, 3072
          %2236 = vsyncadd %s2226, %s2235
          %s2237 = smul.addr %s2233, 128
          %s2238 = scalar_lea.hbm %s5, %s2237
          %s2239 = sshll.u32 %s2229, 4
          %s2240 = int_to_ptr.vmem [resolvable:$true] %s2239
          %2245 = dma.vmem_to_hbm [thread:$0]  %s2240, 3072, %s2238, %s2226, 128, 128, 8
        $region48: #{tpu_custom_call.1} parent=39 // pred_fallthru
          _
      $region40: #{tpu_custom_call.1} parent=5 // pred_fallthru
        _
      %p2246 = scmp.le.s32.totalorder 2, %s15
      // Predicated region
      $region49: #{tpu_custom_call.1} parent=5 // pred_check
        %p2247 = pneg %p2246
      $region50: #{tpu_custom_call.1} parent=5 // pred_check_branch
        %2249 = sbr.rel (%p2247) target = $region52
      $region51: #{tpu_custom_call.1} parent=5 // pred_region
        %s2250 = ssub.s32 %s15, 2
        // Predicated region
        $region53: #{tpu_custom_call.1} parent=51 // pred_check
          %p2251 = pneg %p154
        $region54: #{tpu_custom_call.1} parent=51 // pred_check_branch
          %2253 = sbr.rel (%p2251) target = $region56
        $region55: #{tpu_custom_call.1} parent=51 // pred_region
          %s2254 = sand.u32 %s139, 1
          %s2255 = scalar_lea.sflag [#allocation4], %s2254
          %s2256 = sand.u32 %s139, 1
          %s2257 = smul.addr %s2256, 192
          %s2258 = scalar_lea.vmem [#allocation5], %s2257
          %2259 = dma.done %s2255, 3072
        $region56: #{tpu_custom_call.1} parent=51 // pred_fallthru
          _
      $region52: #{tpu_custom_call.1} parent=5 // pred_fallthru
        _
    $region6: #{tpu_custom_call.1} parent=1 // loop_footer
      %s19 = sadd.s32 1, %s15
    $region7: #{tpu_custom_call.1} parent=1 // loop_footer_branch
      %14 = sbr.rel target = $region3
    $region8: #{tpu_custom_call.1} parent=1 // loop_exit
      _
    %2260 = vsyncpa [#allocation3], 1
    %s2261 = scalar_lea.sflag [#allocation3], 1
    %2262 = vsyncpa %s2261, 1
    %2263 = vsyncpa [#allocation4], 1
    %s2264 = scalar_lea.sflag [#allocation4], 1
    %2265 = vsyncpa %s2264, 1

</llo_original>
